<compile_context>
chip_gen: v7x
topology: tpu7x:2x2x1
jax: 0.10.0
libtpu: 0.0.40
codegen_flags: <defaults>
</compile_context>

<pallas_src>
import math
import functools

import jax
import jax.numpy as jnp
from jax import lax
from jax.experimental import pallas as pl
from jax.experimental.pallas import tpu as pltpu

VOCAB = 64
V_PAD = 128          # vocab padded to the 128-lane width (lane-dense logit stores)
N_EMBD = 32
N_HEAD = 4
N_LAYER = 2
CONTEXT = 16
EPS = 1e-5
TE_SCALE = 1.0       # 'learnable' position encoding -> te_scale == 1


# ---------------------------------------------------------------------------
# small math helpers
# ---------------------------------------------------------------------------
def _layernorm(v, w):
    """Reference-side LayerNorm (with gain), eps=1e-5, no bias."""
    mu = jnp.mean(v, axis=-1, keepdims=True)
    var = jnp.mean((v - mu) ** 2, axis=-1, keepdims=True)
    return (v - mu) * lax.rsqrt(var + EPS) * w


def _norm(v):
    """Kernel-side LayerNorm WITHOUT gain (gains are folded into the weights)."""
    mu = jnp.mean(v, axis=-1, keepdims=True)
    var = jnp.mean((v - mu) ** 2, axis=-1, keepdims=True)
    return (v - mu) * lax.rsqrt(var + EPS)


# Abramowitz & Stegun 7.1.26 erf approximation (|error| <= 1.5e-7), built only
# from exp / mul / add / where so it lowers cleanly in Mosaic on every chip.
_ERF_P = 0.3275911
_ERF_A1 = 0.254829592
_ERF_A2 = -0.284496736
_ERF_A3 = 1.421413741
_ERF_A4 = -1.453152027
_ERF_A5 = 1.061405429


def _erf_approx(x):
    a = jnp.abs(x)
    t = 1.0 / (1.0 + _ERF_P * a)
    poly = ((((_ERF_A5 * t + _ERF_A4) * t + _ERF_A3) * t + _ERF_A2) * t + _ERF_A1) * t
    y = 1.0 - poly * jnp.exp(-a * a)
    return jnp.where(x >= 0, y, -y)


def _gelu_exact(x):
    """nn.GELU() default (exact erf) to within 1.5e-7."""
    return 0.5 * x * (1.0 + _erf_approx(x * (1.0 / math.sqrt(2.0))))


# ---------------------------------------------------------------------------
# Fused Pallas kernel: full nanoGPT forward for BB batch elements per grid step
# ---------------------------------------------------------------------------
def nanogpt_kernel(idx_ref, wte_emb_ref, wpe_ref, head_sel_ref, bias_ref,
                   wqkv_ref, wattn_ref, wfc_ref, wmlp_ref, wte_head_ref,
                   o_ref, *, n_head, n_layer, block_batch, seq_len, vocab):
    """idx (BB*T,1) i32 | wte_emb (2V,C) bf16 hi/lo | wpe (T,C) f32 |
    head_sel (nh*T,C) f32 | bias (nh*T,T) f32 | per-layer bf16 stacks:
    w_qkv (L,C,3C) (ln1 + 1/sqrt(hd) folded), w_attn (L,C,C),
    w_fc (L,C,4C) (ln2 folded), w_mlp (L,4C,C) |
    wte_head (V_PAD,C) bf16 (ln_f folded) | out (BB*T, V_PAD) f32."""
    bf16, f32 = jnp.bfloat16, jnp.float32
    BB, T = block_batch, seq_len
    rows = BB * T
    C = wpe_ref.shape[1]

    # ---- token embedding: exact gather via hi/lo split one-hot (one bf16 MXU dot)
    idx = idx_ref[...]                                               # (rows, 1) i32
    lane = lax.broadcasted_iota(jnp.int32, (rows, 2 * vocab), 1)
    onehot2 = jnp.logical_or(lane == idx, lane == idx + vocab)       # two 1s per row
    onehot2 = onehot2.astype(f32).astype(bf16)
    tok_emb = jnp.dot(onehot2, wte_emb_ref[...],
                      preferred_element_type=f32)                    # (rows, C) ~= f32 wte[idx]
    if TE_SCALE != 1.0:
        tok_emb = tok_emb * TE_SCALE
    x = tok_emb + jnp.tile(wpe_ref[...], (BB, 1))                    # residual stream, f32
    # dropout p = 0.0 -> identity

    head_sel = head_sel_ref[...]                                     # (nh*T, C) f32 channel mask
    bias = bias_ref[...]                                             # (nh*T, T) additive causal mask

    for l in range(n_layer):                                         # static unroll (L=2)
        # ---------------- attention sublayer (ln1 + q-scale folded into w_qkv) ----
        h = _norm(x)                                                 # (rows, C) f32
        qkv = jnp.dot(h.astype(bf16), wqkv_ref[l],
                      preferred_element_type=f32)                    # (rows, 3C)
        ys = []
        for bi in range(BB):                                         # per-batch score/ctx dots
            r0 = bi * T
            q = qkv[r0:r0 + T, 0:C]
            k = qkv[r0:r0 + T, C:2 * C]
            v = qkv[r0:r0 + T, 2 * C:3 * C]
            # all heads in one 2D dot: replicate q per head, mask to that head's channels
            q_rep = (jnp.tile(q, (n_head, 1)) * head_sel).astype(bf16)   # (nh*T, C)
            s = lax.dot_general(q_rep, k.astype(bf16),
                                (((1,), (1,)), ((), ())),
                                preferred_element_type=f32)          # (nh*T, T)
            s = s + bias                                             # causal mask (additive -1e30)
            s = s - jnp.max(s, axis=-1, keepdims=True)
            p = jnp.exp(s)
            p = p * pl.reciprocal(jnp.sum(p, axis=-1, keepdims=True), approx=True)
            ctx = jnp.dot(p.astype(bf16), v.astype(bf16),
                          preferred_element_type=f32)                # (nh*T, C)
            ctx = ctx * head_sel                                     # keep own head's channels
            y = ctx[0:T]
            for hh in range(1, n_head):                              # recombine heads: 3 VPU adds
                y = y + ctx[hh * T:(hh + 1) * T]
            ys.append(y)
        y_all = ys[0] if BB == 1 else jnp.concatenate(ys, axis=0)    # (rows, C)
        x = x + jnp.dot(y_all.astype(bf16), wattn_ref[l],
                        preferred_element_type=f32)                  # out proj + residual

        # ---------------- MLP sublayer (ln2 folded into w_fc) ----
        m = jnp.dot(_norm(x).astype(bf16), wfc_ref[l],
                    preferred_element_type=f32)                      # (rows, 4C)
        m = _gelu_exact(m)                                           # exact-erf GELU
        x = x + jnp.dot(m.astype(bf16), wmlp_ref[l],
                        preferred_element_type=f32)                  # (rows, C)

    # ---- final LayerNorm (gain folded into wte_head) + tied LM head, lane-dense ----
    logits = lax.dot_general(_norm(x).astype(bf16), wte_head_ref[...],
                             (((1,), (1,)), ((), ())),
                             preferred_element_type=f32)             # (rows, V_PAD)
    o_ref[...] = logits


# ---------------------------------------------------------------------------
# Host-side parameter packing (bf16 casts + LayerNorm / scale folding)
# ---------------------------------------------------------------------------
def pack_params(params):
    f32, bf16 = jnp.float32, jnp.bfloat16
    C = N_EMBD
    hd = C // N_HEAD

    ln1 = params['ln1_w'].reshape(N_LAYER, C).astype(f32)
    ln2 = params['ln2_w'].reshape(N_LAYER, C).astype(f32)
    lnf = params['ln_f_w'].reshape(C).astype(f32)

    # fold ln1 gain into w_qkv rows and 1/sqrt(hd) into the q columns
    qcol_scale = jnp.concatenate([jnp.full((C,), 1.0 / math.sqrt(hd), f32),
                                  jnp.ones((2 * C,), f32)])
    w_qkv = (params['w_qkv'] * ln1[:, :, None] * qcol_scale[None, None, :]).astype(bf16)
    # fold ln2 gain into w_fc rows
    w_fc = (params['w_fc'] * ln2[:, :, None]).astype(bf16)
    w_attn = params['w_attn_proj'].astype(bf16)
    w_mlp = params['w_mlp_proj'].astype(bf16)

    # embedding table: hi/lo bf16 split for an exact in-kernel gather via one MXU dot
    wte = params['wte'].astype(f32)                                  # (VOCAB, C)
    wte_hi = wte.astype(bf16)
    wte_lo = (wte - wte_hi.astype(f32)).astype(bf16)
    wte_emb = jnp.concatenate([wte_hi, wte_lo], axis=0)              # (2*VOCAB, C) bf16

    # tied LM head with ln_f gain folded in, padded to 128 rows (lane-dense logits)
    wte_head = jnp.pad(wte * lnf[None, :],
                       ((0, V_PAD - VOCAB), (0, 0))).astype(bf16)    # (V_PAD, C)

    return {'wte_emb': wte_emb, 'wte_head': wte_head,
            'wpe': params['wpe'].astype(f32),
            'w_qkv': w_qkv, 'w_attn': w_attn, 'w_fc': w_fc, 'w_mlp': w_mlp}


def _pick_block_batch(batch, seq):
    """Fold batch elements into one grid step so BB*T >= 128 when possible,
    but keep >= 2 grid steps when batch allows (both v7x TensorCores busy)."""
    target = max(1, -(-128 // seq))                                  # cdiv(128, seq)
    divisors = [d for d in range(1, batch + 1) if batch % d == 0]
    cands = [d for d in divisors if d <= target] or [1]
    if batch >= 2:
        two_step = [d for d in cands if batch // d >= 2]
        if two_step:
            return max(two_step)
    return max(cands)


# ---------------------------------------------------------------------------
# Wrapper: one pallas_call for the whole model
# ---------------------------------------------------------------------------
@jax.jit
def nanogpt_forward(idx, packed):
    B, T = idx.shape
    assert T % 8 == 0 and T <= CONTEXT, "T must be a multiple of 8 (sublane tiling)"
    C = N_EMBD
    hd = C // N_HEAD
    nt = N_HEAD * T
    f32 = jnp.float32

    BB = _pick_block_batch(B, T)
    nblk = B // BB
    rows = BB * T

    idx_flat = idx.reshape(B * T, 1).astype(jnp.int32)
    wpe = packed['wpe'][:T]                                          # (T, C)

    # constant masks (hoisted out of the kernel; constant index maps)
    row_head = jnp.arange(nt)[:, None] // T
    col_head = jnp.arange(C)[None, :] // hd
    head_sel = (row_head == col_head).astype(f32)                    # (nh*T, C)
    qpos = jnp.tile(jnp.arange(T), (N_HEAD,))[:, None]
    kpos = jnp.arange(T)[None, :]
    causal_bias = jnp.where(kpos <= qpos, 0.0, -1e30).astype(f32)    # (nh*T, T)

    kern = functools.partial(nanogpt_kernel, n_head=N_HEAD, n_layer=N_LAYER,
                             block_batch=BB, seq_len=T, vocab=VOCAB)

    logits_pad = pl.pallas_call(
        kern,
        out_shape=jax.ShapeDtypeStruct((B * T, V_PAD), jnp.float32),
        grid=(nblk,),
        in_specs=[
            pl.BlockSpec((rows, 1), lambda b: (b, 0)),               # token ids
            pl.BlockSpec((2 * VOCAB, C), lambda b: (0, 0)),          # wte hi/lo (embedding)
            pl.BlockSpec((T, C), lambda b: (0, 0)),                  # wpe[:T]
            pl.BlockSpec((nt, C), lambda b: (0, 0)),                 # head channel mask
            pl.BlockSpec((nt, T), lambda b: (0, 0)),                 # causal additive mask
            pl.BlockSpec((N_LAYER, C, 3 * C), lambda b: (0, 0, 0)),  # qkv (folded, bf16)
            pl.BlockSpec((N_LAYER, C, C), lambda b: (0, 0, 0)),      # attn out proj (bf16)
            pl.BlockSpec((N_LAYER, C, 4 * C), lambda b: (0, 0, 0)),  # mlp fc (folded, bf16)
            pl.BlockSpec((N_LAYER, 4 * C, C), lambda b: (0, 0, 0)),  # mlp proj (bf16)
            pl.BlockSpec((V_PAD, C), lambda b: (0, 0)),              # tied LM head (folded, bf16)
        ],
        out_specs=pl.BlockSpec((rows, V_PAD), lambda b: (b, 0)),
        compiler_params=pltpu.CompilerParams(dimension_semantics=("parallel",)),
    )(idx_flat, packed['wte_emb'], wpe, head_sel, causal_bias,
      packed['w_qkv'], packed['w_attn'], packed['w_fc'], packed['w_mlp'],
      packed['wte_head'])

    return logits_pad.reshape(B, T, V_PAD)[..., :VOCAB]


# ---------------------------------------------------------------------------
# Pure-JAX f32 reference (mirrors the PyTorch module, uses UNFOLDED params)
# ---------------------------------------------------------------------------
def ref_forward(idx, params):
    B, T = idx.shape
    C, nh = N_EMBD, N_HEAD
    hd = C // nh
    x = jnp.take(params['wte'], idx, axis=0) * TE_SCALE + params['wpe'][:T][None]
    for l in range(N_LAYER):
        h = _layernorm(x, params['ln1_w'][l])
        qkv = h @ params['w_qkv'][l]
        q, k, v = qkv[..., :C], qkv[..., C:2 * C], qkv[..., 2 * C:]
        q = q.reshape(B, T, nh, hd)
        k = k.reshape(B, T, nh, hd)
        v = v.reshape(B, T, nh, hd)
        att = jnp.einsum('bthd,bshd->bhts', q, k) / math.sqrt(hd)
        mask = jnp.tril(jnp.ones((T, T), bool))
        att = jnp.where(mask[None, None], att, -1e30)
        att = jax.nn.softmax(att, axis=-1)
        y = jnp.einsum('bhts,bshd->bthd', att, v).reshape(B, T, C)
        x = x + y @ params['w_attn_proj'][l]
        h2 = _layernorm(x, params['ln2_w'][l])
        x = x + jax.nn.gelu(h2 @ params['w_fc'][l],
                            approximate=False) @ params['w_mlp_proj'][l]
    x = _layernorm(x, params['ln_f_w'])
    return x @ params['wte'].T


# ---------------------------------------------------------------------------
# Deterministic parameter init (matches module's init scheme; layer-stacked)
# ---------------------------------------------------------------------------
def init_params(key):
    std = 0.02
    cproj_std = 0.02 / math.sqrt(2 * N_LAYER)
    keys = jax.random.split(key, 2 + 4 * N_LAYER)
    w_qkv, w_attn, w_fc, w_mlp = [], [], [], []
    for i in range(N_LAYER):
        k0, k1, k2, k3 = keys[2 + 4 * i: 2 + 4 * i + 4]
        w_qkv.append(std * jax.random.normal(k0, (N_EMBD, 3 * N_EMBD), jnp.float32))
        w_attn.append(cproj_std * jax.random.normal(k1, (N_EMBD, N_EMBD), jnp.float32))
        w_fc.append(std * jax.random.normal(k2, (N_EMBD, 4 * N_EMBD), jnp.float32))
        w_mlp.append(cproj_std * jax.random.normal(k3, (4 * N_EMBD, N_EMBD), jnp.float32))
    return {
        'wte': std * jax.random.normal(keys[0], (VOCAB, N_EMBD), jnp.float32),
        'wpe': std * jax.random.normal(keys[1], (CONTEXT, N_EMBD), jnp.float32),
        'ln_f_w': jnp.ones((1, N_EMBD), jnp.float32),
        'ln1_w': jnp.ones((N_LAYER, 1, N_EMBD), jnp.float32),
        'ln2_w': jnp.ones((N_LAYER, 1, N_EMBD), jnp.float32),
        'w_qkv': jnp.stack(w_qkv),
        'w_attn_proj': jnp.stack(w_attn),
        'w_fc': jnp.stack(w_fc),
        'w_mlp_proj': jnp.stack(w_mlp),
    }


if __name__ == "__main__":
    key = jax.random.PRNGKey(0)
    kp, ki = jax.random.split(key)
    params = init_params(kp)
    packed = pack_params(params)

    B, T = 2, 8
    idx = jax.random.randint(ki, (B, T), 0, VOCAB, dtype=jnp.int32)

    logits = jax.block_until_ready(nanogpt_forward(idx, packed))
    assert logits.shape == (B, T, VOCAB), logits.shape

    ref = ref_forward(idx, params)
    # bf16 MXU operands + approx softmax reciprocal introduce small, expected
    # drift vs the exact-f32 reference; the token-embedding gather and the
    # LayerNorm/softmax statistics themselves are (near-)exact f32.
    if not bool(jnp.allclose(logits, ref, atol=2e-3, rtol=2e-2)):
        raise AssertionError(
            f"Pallas output does not match reference; max abs err = "
            f"{float(jnp.max(jnp.abs(logits - ref)))}")

    print("KERNEL_OK")
</pallas_src>

<mosaic_0001>
module attributes {stable_mosaic.version = 11 : i64} {
  func.func @nanogpt_kernel(%arg0: i32, %arg1: memref<8x1xi32, #tpu.memory_space<vmem>>, %arg2: memref<128x32xbf16, #tpu.memory_space<vmem>>, %arg3: memref<8x32xf32, #tpu.memory_space<vmem>>, %arg4: memref<32x32xf32, #tpu.memory_space<vmem>>, %arg5: memref<32x8xf32, #tpu.memory_space<vmem>>, %arg6: memref<2x32x96xbf16, #tpu.memory_space<vmem>>, %arg7: memref<2x32x32xbf16, #tpu.memory_space<vmem>>, %arg8: memref<2x32x128xbf16, #tpu.memory_space<vmem>>, %arg9: memref<2x128x32xbf16, #tpu.memory_space<vmem>>, %arg10: memref<128x32xbf16, #tpu.memory_space<vmem>>, %arg11: memref<8x128xf32, #tpu.memory_space<vmem>>) attributes {dimension_semantics = [#tpu.dimension_semantics<parallel>], iteration_bounds = array<i64: 2>, scalar_prefetch = 0 : i64, scratch_operands = 0 : i64, tpu.core_type = #tpu.core_type<tc>, window_params = [{transform_indices = @transform_0, window_bounds = array<i64: 8, 1>}, {pipeline_mode = #tpu.pipeline_mode<synchronous>, transform_indices = @transform_1, window_bounds = array<i64: 128, 32>}, {pipeline_mode = #tpu.pipeline_mode<synchronous>, transform_indices = @transform_2, window_bounds = array<i64: 8, 32>}, {pipeline_mode = #tpu.pipeline_mode<synchronous>, transform_indices = @transform_3, window_bounds = array<i64: 32, 32>}, {pipeline_mode = #tpu.pipeline_mode<synchronous>, transform_indices = @transform_4, window_bounds = array<i64: 32, 8>}, {pipeline_mode = #tpu.pipeline_mode<synchronous>, transform_indices = @transform_5, window_bounds = array<i64: 2, 32, 96>}, {pipeline_mode = #tpu.pipeline_mode<synchronous>, transform_indices = @transform_6, window_bounds = array<i64: 2, 32, 32>}, {pipeline_mode = #tpu.pipeline_mode<synchronous>, transform_indices = @transform_7, window_bounds = array<i64: 2, 32, 128>}, {pipeline_mode = #tpu.pipeline_mode<synchronous>, transform_indices = @transform_8, window_bounds = array<i64: 2, 128, 32>}, {pipeline_mode = #tpu.pipeline_mode<synchronous>, transform_indices = @transform_9, window_bounds = array<i64: 128, 32>}, {transform_indices = @transform_10, window_bounds = array<i64: 8, 128>}]} {
    %c0 = arith.constant 0 : index
    %c0_0 = arith.constant 0 : index
    %0 = vector.load %arg1[%c0, %c0_0] : memref<8x1xi32, #tpu.memory_space<vmem>>, vector<8x1xi32>
    %1 = tpu.iota {dimensions = array<i32: 1>} : vector<8x128xi32>
    %2 = vector.broadcast %0 : vector<8x1xi32> to vector<8x128xi32>
    %3 = arith.cmpi eq, %1, %2 : vector<8x128xi32>
    %c64_i32 = arith.constant 64 : i32
    %4 = vector.broadcast %c64_i32 : i32 to vector<8x1xi32>
    %5 = arith.addi %0, %4 : vector<8x1xi32>
    %6 = vector.broadcast %5 : vector<8x1xi32> to vector<8x128xi32>
    %7 = arith.cmpi eq, %1, %6 : vector<8x128xi32>
    %8 = arith.ori %3, %7 : vector<8x128xi1>
    %9 = arith.extui %8 : vector<8x128xi1> to vector<8x128xi32>
    %10 = arith.sitofp %9 : vector<8x128xi32> to vector<8x128xf32>
    %11 = arith.truncf %10 : vector<8x128xf32> to vector<8x128xbf16>
    %c0_1 = arith.constant 0 : index
    %c0_2 = arith.constant 0 : index
    %12 = vector.load %arg2[%c0_1, %c0_2] : memref<128x32xbf16, #tpu.memory_space<vmem>>, vector<128x32xbf16>
    %cst = arith.constant dense<0.000000e+00> : vector<8x32xf32>
    %13 = tpu.matmul %11, %12, %cst {dimension_numbers = #tpu.dot_dimension_numbers<[1], [0], [0], [1], [0, 0, 1, 1], [], []>} : vector<8x128xbf16>, vector<128x32xbf16>, vector<8x32xf32> -> vector<8x32xf32>
    %c0_3 = arith.constant 0 : index
    %c0_4 = arith.constant 0 : index
    %14 = vector.load %arg3[%c0_3, %c0_4] : memref<8x32xf32, #tpu.memory_space<vmem>>, vector<8x32xf32>
    %15 = arith.addf %13, %14 : vector<8x32xf32>
    %c0_5 = arith.constant 0 : index
    %c0_6 = arith.constant 0 : index
    %16 = vector.load %arg4[%c0_5, %c0_6] : memref<32x32xf32, #tpu.memory_space<vmem>>, vector<32x32xf32>
    %c0_7 = arith.constant 0 : index
    %c0_8 = arith.constant 0 : index
    %17 = vector.load %arg5[%c0_7, %c0_8] : memref<32x8xf32, #tpu.memory_space<vmem>>, vector<32x8xf32>
    %cst_9 = arith.constant dense<0.000000e+00> : vector<8xf32>
    %18 = vector.multi_reduction <add>, %15, %cst_9 [1] : vector<8x32xf32> to vector<8xf32>
    %19 = vector.shape_cast %18 : vector<8xf32> to vector<8x1xf32>
    %cst_10 = arith.constant 3.200000e+01 : f32
    %20 = vector.broadcast %cst_10 : f32 to vector<8x1xf32>
    %21 = arith.divf %19, %20 : vector<8x1xf32>
    %22 = vector.broadcast %21 : vector<8x1xf32> to vector<8x32xf32>
    %23 = arith.subf %15, %22 : vector<8x32xf32>
    %24 = arith.mulf %23, %23 : vector<8x32xf32>
    %cst_11 = arith.constant dense<0.000000e+00> : vector<8xf32>
    %25 = vector.multi_reduction <add>, %24, %cst_11 [1] : vector<8x32xf32> to vector<8xf32>
    %26 = vector.shape_cast %25 : vector<8xf32> to vector<8x1xf32>
    %cst_12 = arith.constant 3.200000e+01 : f32
    %27 = vector.broadcast %cst_12 : f32 to vector<8x1xf32>
    %28 = arith.divf %26, %27 : vector<8x1xf32>
    %29 = vector.broadcast %21 : vector<8x1xf32> to vector<8x32xf32>
    %30 = arith.subf %15, %29 : vector<8x32xf32>
    %cst_13 = arith.constant 9.99999974E-6 : f32
    %31 = vector.broadcast %cst_13 : f32 to vector<8x1xf32>
    %32 = arith.addf %28, %31 : vector<8x1xf32>
    %33 = math.rsqrt %32 : vector<8x1xf32>
    %34 = vector.broadcast %33 : vector<8x1xf32> to vector<8x32xf32>
    %35 = arith.mulf %30, %34 : vector<8x32xf32>
    %36 = arith.truncf %35 : vector<8x32xf32> to vector<8x32xbf16>
    %c0_14 = arith.constant 0 : index
    %c0_15 = arith.constant 0 : index
    %c0_16 = arith.constant 0 : index
    %37 = vector.load %arg6[%c0_14, %c0_15, %c0_16] : memref<2x32x96xbf16, #tpu.memory_space<vmem>>, vector<1x32x96xbf16>
    %38 = vector.shape_cast %37 : vector<1x32x96xbf16> to vector<32x96xbf16>
    %cst_17 = arith.constant dense<0.000000e+00> : vector<8x96xf32>
    %39 = tpu.matmul %36, %38, %cst_17 {dimension_numbers = #tpu.dot_dimension_numbers<[1], [0], [0], [1], [0, 0, 1, 1], [], []>} : vector<8x32xbf16>, vector<32x96xbf16>, vector<8x96xf32> -> vector<8x96xf32>
    %40 = vector.extract_strided_slice %39 {offsets = [0, 0], sizes = [8, 32], strides = [1, 1]} : vector<8x96xf32> to vector<8x32xf32>
    %41 = vector.extract_strided_slice %39 {offsets = [0, 32], sizes = [8, 32], strides = [1, 1]} : vector<8x96xf32> to vector<8x32xf32>
    %42 = vector.extract_strided_slice %39 {offsets = [0, 64], sizes = [8, 32], strides = [1, 1]} : vector<8x96xf32> to vector<8x32xf32>
    %43 = tpu.concatenate %40, %40, %40, %40 in 0 : vector<8x32xf32>, vector<8x32xf32>, vector<8x32xf32>, vector<8x32xf32> -> vector<32x32xf32>
    %44 = arith.mulf %43, %16 : vector<32x32xf32>
    %45 = arith.truncf %44 : vector<32x32xf32> to vector<32x32xbf16>
    %46 = arith.truncf %41 : vector<8x32xf32> to vector<8x32xbf16>
    %cst_18 = arith.constant dense<0.000000e+00> : vector<32x8xf32>
    %47 = tpu.matmul %45, %46, %cst_18 {dimension_numbers = #tpu.dot_dimension_numbers<[1], [1], [0], [0], [0, 0, 1, 0], [], []>} : vector<32x32xbf16>, vector<8x32xbf16>, vector<32x8xf32> -> vector<32x8xf32>
    %48 = arith.addf %47, %17 : vector<32x8xf32>
    %cst_19 = arith.constant dense<0xFF800000> : vector<32xf32>
    %49 = vector.multi_reduction <maximumf>, %48, %cst_19 [1] : vector<32x8xf32> to vector<32xf32>
    %50 = vector.shape_cast %49 : vector<32xf32> to vector<32x1xf32>
    %51 = vector.broadcast %50 : vector<32x1xf32> to vector<32x8xf32>
    %52 = arith.subf %48, %51 : vector<32x8xf32>
    %53 = math.exp %52 : vector<32x8xf32>
    %cst_20 = arith.constant dense<0.000000e+00> : vector<32xf32>
    %54 = vector.multi_reduction <add>, %53, %cst_20 [1] : vector<32x8xf32> to vector<32xf32>
    %55 = vector.shape_cast %54 : vector<32xf32> to vector<32x1xf32>
    %56 = tpu.reciprocal %55 {approx = true} : vector<32x1xf32> -> vector<32x1xf32>
    %57 = vector.broadcast %56 : vector<32x1xf32> to vector<32x8xf32>
    %58 = arith.mulf %53, %57 : vector<32x8xf32>
    %59 = arith.truncf %58 : vector<32x8xf32> to vector<32x8xbf16>
    %60 = arith.truncf %42 : vector<8x32xf32> to vector<8x32xbf16>
    %cst_21 = arith.constant dense<0.000000e+00> : vector<32x32xf32>
    %61 = tpu.matmul %59, %60, %cst_21 {dimension_numbers = #tpu.dot_dimension_numbers<[1], [0], [0], [1], [0, 0, 1, 1], [], []>} : vector<32x8xbf16>, vector<8x32xbf16>, vector<32x32xf32> -> vector<32x32xf32>
    %62 = arith.mulf %61, %16 : vector<32x32xf32>
    %63 = vector.extract_strided_slice %62 {offsets = [0, 0], sizes = [8, 32], strides = [1, 1]} : vector<32x32xf32> to vector<8x32xf32>
    %64 = vector.extract_strided_slice %62 {offsets = [8, 0], sizes = [8, 32], strides = [1, 1]} : vector<32x32xf32> to vector<8x32xf32>
    %65 = arith.addf %63, %64 : vector<8x32xf32>
    %66 = vector.extract_strided_slice %62 {offsets = [16, 0], sizes = [8, 32], strides = [1, 1]} : vector<32x32xf32> to vector<8x32xf32>
    %67 = arith.addf %65, %66 : vector<8x32xf32>
    %68 = vector.extract_strided_slice %62 {offsets = [24, 0], sizes = [8, 32], strides = [1, 1]} : vector<32x32xf32> to vector<8x32xf32>
    %69 = arith.addf %67, %68 : vector<8x32xf32>
    %70 = arith.truncf %69 : vector<8x32xf32> to vector<8x32xbf16>
    %c0_22 = arith.constant 0 : index
    %c0_23 = arith.constant 0 : index
    %c0_24 = arith.constant 0 : index
    %71 = vector.load %arg7[%c0_22, %c0_23, %c0_24] : memref<2x32x32xbf16, #tpu.memory_space<vmem>>, vector<1x32x32xbf16>
    %72 = vector.shape_cast %71 : vector<1x32x32xbf16> to vector<32x32xbf16>
    %cst_25 = arith.constant dense<0.000000e+00> : vector<8x32xf32>
    %73 = tpu.matmul %70, %72, %cst_25 {dimension_numbers = #tpu.dot_dimension_numbers<[1], [0], [0], [1], [0, 0, 1, 1], [], []>} : vector<8x32xbf16>, vector<32x32xbf16>, vector<8x32xf32> -> vector<8x32xf32>
    %74 = arith.addf %15, %73 : vector<8x32xf32>
    %cst_26 = arith.constant dense<0.000000e+00> : vector<8xf32>
    %75 = vector.multi_reduction <add>, %74, %cst_26 [1] : vector<8x32xf32> to vector<8xf32>
    %76 = vector.shape_cast %75 : vector<8xf32> to vector<8x1xf32>
    %cst_27 = arith.constant 3.200000e+01 : f32
    %77 = vector.broadcast %cst_27 : f32 to vector<8x1xf32>
    %78 = arith.divf %76, %77 : vector<8x1xf32>
    %79 = vector.broadcast %78 : vector<8x1xf32> to vector<8x32xf32>
    %80 = arith.subf %74, %79 : vector<8x32xf32>
    %81 = arith.mulf %80, %80 : vector<8x32xf32>
    %cst_28 = arith.constant dense<0.000000e+00> : vector<8xf32>
    %82 = vector.multi_reduction <add>, %81, %cst_28 [1] : vector<8x32xf32> to vector<8xf32>
    %83 = vector.shape_cast %82 : vector<8xf32> to vector<8x1xf32>
    %cst_29 = arith.constant 3.200000e+01 : f32
    %84 = vector.broadcast %cst_29 : f32 to vector<8x1xf32>
    %85 = arith.divf %83, %84 : vector<8x1xf32>
    %86 = vector.broadcast %78 : vector<8x1xf32> to vector<8x32xf32>
    %87 = arith.subf %74, %86 : vector<8x32xf32>
    %cst_30 = arith.constant 9.99999974E-6 : f32
    %88 = vector.broadcast %cst_30 : f32 to vector<8x1xf32>
    %89 = arith.addf %85, %88 : vector<8x1xf32>
    %90 = math.rsqrt %89 : vector<8x1xf32>
    %91 = vector.broadcast %90 : vector<8x1xf32> to vector<8x32xf32>
    %92 = arith.mulf %87, %91 : vector<8x32xf32>
    %93 = arith.truncf %92 : vector<8x32xf32> to vector<8x32xbf16>
    %c0_31 = arith.constant 0 : index
    %c0_32 = arith.constant 0 : index
    %c0_33 = arith.constant 0 : index
    %94 = vector.load %arg8[%c0_31, %c0_32, %c0_33] : memref<2x32x128xbf16, #tpu.memory_space<vmem>>, vector<1x32x128xbf16>
    %95 = vector.shape_cast %94 : vector<1x32x128xbf16> to vector<32x128xbf16>
    %cst_34 = arith.constant dense<0.000000e+00> : vector<8x128xf32>
    %96 = tpu.matmul %93, %95, %cst_34 {dimension_numbers = #tpu.dot_dimension_numbers<[1], [0], [0], [1], [0, 0, 1, 1], [], []>} : vector<8x32xbf16>, vector<32x128xbf16>, vector<8x128xf32> -> vector<8x128xf32>
    %cst_35 = arith.constant 5.000000e-01 : f32
    %97 = vector.broadcast %cst_35 : f32 to vector<8x128xf32>
    %98 = arith.mulf %97, %96 : vector<8x128xf32>
    %cst_36 = arith.constant 0.707106769 : f32
    %99 = vector.broadcast %cst_36 : f32 to vector<8x128xf32>
    %100 = arith.mulf %96, %99 : vector<8x128xf32>
    %101 = math.absf %100 : vector<8x128xf32>
    %cst_37 = arith.constant 0.327591091 : f32
    %102 = vector.broadcast %cst_37 : f32 to vector<8x128xf32>
    %103 = arith.mulf %102, %101 : vector<8x128xf32>
    %cst_38 = arith.constant 1.000000e+00 : f32
    %104 = vector.broadcast %cst_38 : f32 to vector<8x128xf32>
    %105 = arith.addf %104, %103 : vector<8x128xf32>
    %cst_39 = arith.constant 1.000000e+00 : f32
    %106 = vector.broadcast %cst_39 : f32 to vector<8x128xf32>
    %107 = arith.divf %106, %105 : vector<8x128xf32>
    %cst_40 = arith.constant 1.06140542 : f32
    %108 = vector.broadcast %cst_40 : f32 to vector<8x128xf32>
    %109 = arith.mulf %108, %107 : vector<8x128xf32>
    %cst_41 = arith.constant -1.45315206 : f32
    %110 = vector.broadcast %cst_41 : f32 to vector<8x128xf32>
    %111 = arith.addf %109, %110 : vector<8x128xf32>
    %112 = arith.mulf %111, %107 : vector<8x128xf32>
    %cst_42 = arith.constant 1.42141378 : f32
    %113 = vector.broadcast %cst_42 : f32 to vector<8x128xf32>
    %114 = arith.addf %112, %113 : vector<8x128xf32>
    %115 = arith.mulf %114, %107 : vector<8x128xf32>
    %cst_43 = arith.constant -0.284496725 : f32
    %116 = vector.broadcast %cst_43 : f32 to vector<8x128xf32>
    %117 = arith.addf %115, %116 : vector<8x128xf32>
    %118 = arith.mulf %117, %107 : vector<8x128xf32>
    %cst_44 = arith.constant 0.254829586 : f32
    %119 = vector.broadcast %cst_44 : f32 to vector<8x128xf32>
    %120 = arith.addf %118, %119 : vector<8x128xf32>
    %121 = arith.mulf %120, %107 : vector<8x128xf32>
    %cst_45 = arith.constant 0.000000e+00 : f32
    %122 = vector.broadcast %cst_45 : f32 to vector<8x128xf32>
    %123 = arith.subf %122, %101 : vector<8x128xf32>
    %124 = arith.mulf %123, %101 : vector<8x128xf32>
    %125 = math.exp %124 : vector<8x128xf32>
    %126 = arith.mulf %121, %125 : vector<8x128xf32>
    %cst_46 = arith.constant 1.000000e+00 : f32
    %127 = vector.broadcast %cst_46 : f32 to vector<8x128xf32>
    %128 = arith.subf %127, %126 : vector<8x128xf32>
    %cst_47 = arith.constant 0.000000e+00 : f32
    %129 = vector.broadcast %cst_47 : f32 to vector<8x128xf32>
    %130 = arith.cmpf oge, %100, %129 : vector<8x128xf32>
    %cst_48 = arith.constant 0.000000e+00 : f32
    %131 = vector.broadcast %cst_48 : f32 to vector<8x128xf32>
    %132 = arith.subf %131, %128 : vector<8x128xf32>
    %133 = arith.select %130, %128, %132 : vector<8x128xi1>, vector<8x128xf32>
    %cst_49 = arith.constant 1.000000e+00 : f32
    %134 = vector.broadcast %cst_49 : f32 to vector<8x128xf32>
    %135 = arith.addf %134, %133 : vector<8x128xf32>
    %136 = arith.mulf %98, %135 : vector<8x128xf32>
    %137 = arith.truncf %136 : vector<8x128xf32> to vector<8x128xbf16>
    %c0_50 = arith.constant 0 : index
    %c0_51 = arith.constant 0 : index
    %c0_52 = arith.constant 0 : index
    %138 = vector.load %arg9[%c0_50, %c0_51, %c0_52] : memref<2x128x32xbf16, #tpu.memory_space<vmem>>, vector<1x128x32xbf16>
    %139 = vector.shape_cast %138 : vector<1x128x32xbf16> to vector<128x32xbf16>
    %cst_53 = arith.constant dense<0.000000e+00> : vector<8x32xf32>
    %140 = tpu.matmul %137, %139, %cst_53 {dimension_numbers = #tpu.dot_dimension_numbers<[1], [0], [0], [1], [0, 0, 1, 1], [], []>} : vector<8x128xbf16>, vector<128x32xbf16>, vector<8x32xf32> -> vector<8x32xf32>
    %141 = arith.addf %74, %140 : vector<8x32xf32>
    %cst_54 = arith.constant dense<0.000000e+00> : vector<8xf32>
    %142 = vector.multi_reduction <add>, %141, %cst_54 [1] : vector<8x32xf32> to vector<8xf32>
    %143 = vector.shape_cast %142 : vector<8xf32> to vector<8x1xf32>
    %cst_55 = arith.constant 3.200000e+01 : f32
    %144 = vector.broadcast %cst_55 : f32 to vector<8x1xf32>
    %145 = arith.divf %143, %144 : vector<8x1xf32>
    %146 = vector.broadcast %145 : vector<8x1xf32> to vector<8x32xf32>
    %147 = arith.subf %141, %146 : vector<8x32xf32>
    %148 = arith.mulf %147, %147 : vector<8x32xf32>
    %cst_56 = arith.constant dense<0.000000e+00> : vector<8xf32>
    %149 = vector.multi_reduction <add>, %148, %cst_56 [1] : vector<8x32xf32> to vector<8xf32>
    %150 = vector.shape_cast %149 : vector<8xf32> to vector<8x1xf32>
    %cst_57 = arith.constant 3.200000e+01 : f32
    %151 = vector.broadcast %cst_57 : f32 to vector<8x1xf32>
    %152 = arith.divf %150, %151 : vector<8x1xf32>
    %153 = vector.broadcast %145 : vector<8x1xf32> to vector<8x32xf32>
    %154 = arith.subf %141, %153 : vector<8x32xf32>
    %cst_58 = arith.constant 9.99999974E-6 : f32
    %155 = vector.broadcast %cst_58 : f32 to vector<8x1xf32>
    %156 = arith.addf %152, %155 : vector<8x1xf32>
    %157 = math.rsqrt %156 : vector<8x1xf32>
    %158 = vector.broadcast %157 : vector<8x1xf32> to vector<8x32xf32>
    %159 = arith.mulf %154, %158 : vector<8x32xf32>
    %160 = arith.truncf %159 : vector<8x32xf32> to vector<8x32xbf16>
    %c1 = arith.constant 1 : index
    %c0_59 = arith.constant 0 : index
    %c0_60 = arith.constant 0 : index
    %161 = vector.load %arg6[%c1, %c0_59, %c0_60] : memref<2x32x96xbf16, #tpu.memory_space<vmem>>, vector<1x32x96xbf16>
    %162 = vector.shape_cast %161 : vector<1x32x96xbf16> to vector<32x96xbf16>
    %cst_61 = arith.constant dense<0.000000e+00> : vector<8x96xf32>
    %163 = tpu.matmul %160, %162, %cst_61 {dimension_numbers = #tpu.dot_dimension_numbers<[1], [0], [0], [1], [0, 0, 1, 1], [], []>} : vector<8x32xbf16>, vector<32x96xbf16>, vector<8x96xf32> -> vector<8x96xf32>
    %164 = vector.extract_strided_slice %163 {offsets = [0, 0], sizes = [8, 32], strides = [1, 1]} : vector<8x96xf32> to vector<8x32xf32>
    %165 = vector.extract_strided_slice %163 {offsets = [0, 32], sizes = [8, 32], strides = [1, 1]} : vector<8x96xf32> to vector<8x32xf32>
    %166 = vector.extract_strided_slice %163 {offsets = [0, 64], sizes = [8, 32], strides = [1, 1]} : vector<8x96xf32> to vector<8x32xf32>
    %167 = tpu.concatenate %164, %164, %164, %164 in 0 : vector<8x32xf32>, vector<8x32xf32>, vector<8x32xf32>, vector<8x32xf32> -> vector<32x32xf32>
    %168 = arith.mulf %167, %16 : vector<32x32xf32>
    %169 = arith.truncf %168 : vector<32x32xf32> to vector<32x32xbf16>
    %170 = arith.truncf %165 : vector<8x32xf32> to vector<8x32xbf16>
    %cst_62 = arith.constant dense<0.000000e+00> : vector<32x8xf32>
    %171 = tpu.matmul %169, %170, %cst_62 {dimension_numbers = #tpu.dot_dimension_numbers<[1], [1], [0], [0], [0, 0, 1, 0], [], []>} : vector<32x32xbf16>, vector<8x32xbf16>, vector<32x8xf32> -> vector<32x8xf32>
    %172 = arith.addf %171, %17 : vector<32x8xf32>
    %cst_63 = arith.constant dense<0xFF800000> : vector<32xf32>
    %173 = vector.multi_reduction <maximumf>, %172, %cst_63 [1] : vector<32x8xf32> to vector<32xf32>
    %174 = vector.shape_cast %173 : vector<32xf32> to vector<32x1xf32>
    %175 = vector.broadcast %174 : vector<32x1xf32> to vector<32x8xf32>
    %176 = arith.subf %172, %175 : vector<32x8xf32>
    %177 = math.exp %176 : vector<32x8xf32>
    %cst_64 = arith.constant dense<0.000000e+00> : vector<32xf32>
    %178 = vector.multi_reduction <add>, %177, %cst_64 [1] : vector<32x8xf32> to vector<32xf32>
    %179 = vector.shape_cast %178 : vector<32xf32> to vector<32x1xf32>
    %180 = tpu.reciprocal %179 {approx = true} : vector<32x1xf32> -> vector<32x1xf32>
    %181 = vector.broadcast %180 : vector<32x1xf32> to vector<32x8xf32>
    %182 = arith.mulf %177, %181 : vector<32x8xf32>
    %183 = arith.truncf %182 : vector<32x8xf32> to vector<32x8xbf16>
    %184 = arith.truncf %166 : vector<8x32xf32> to vector<8x32xbf16>
    %cst_65 = arith.constant dense<0.000000e+00> : vector<32x32xf32>
    %185 = tpu.matmul %183, %184, %cst_65 {dimension_numbers = #tpu.dot_dimension_numbers<[1], [0], [0], [1], [0, 0, 1, 1], [], []>} : vector<32x8xbf16>, vector<8x32xbf16>, vector<32x32xf32> -> vector<32x32xf32>
    %186 = arith.mulf %185, %16 : vector<32x32xf32>
    %187 = vector.extract_strided_slice %186 {offsets = [0, 0], sizes = [8, 32], strides = [1, 1]} : vector<32x32xf32> to vector<8x32xf32>
    %188 = vector.extract_strided_slice %186 {offsets = [8, 0], sizes = [8, 32], strides = [1, 1]} : vector<32x32xf32> to vector<8x32xf32>
    %189 = arith.addf %187, %188 : vector<8x32xf32>
    %190 = vector.extract_strided_slice %186 {offsets = [16, 0], sizes = [8, 32], strides = [1, 1]} : vector<32x32xf32> to vector<8x32xf32>
    %191 = arith.addf %189, %190 : vector<8x32xf32>
    %192 = vector.extract_strided_slice %186 {offsets = [24, 0], sizes = [8, 32], strides = [1, 1]} : vector<32x32xf32> to vector<8x32xf32>
    %193 = arith.addf %191, %192 : vector<8x32xf32>
    %194 = arith.truncf %193 : vector<8x32xf32> to vector<8x32xbf16>
    %c1_66 = arith.constant 1 : index
    %c0_67 = arith.constant 0 : index
    %c0_68 = arith.constant 0 : index
    %195 = vector.load %arg7[%c1_66, %c0_67, %c0_68] : memref<2x32x32xbf16, #tpu.memory_space<vmem>>, vector<1x32x32xbf16>
    %196 = vector.shape_cast %195 : vector<1x32x32xbf16> to vector<32x32xbf16>
    %cst_69 = arith.constant dense<0.000000e+00> : vector<8x32xf32>
    %197 = tpu.matmul %194, %196, %cst_69 {dimension_numbers = #tpu.dot_dimension_numbers<[1], [0], [0], [1], [0, 0, 1, 1], [], []>} : vector<8x32xbf16>, vector<32x32xbf16>, vector<8x32xf32> -> vector<8x32xf32>
    %198 = arith.addf %141, %197 : vector<8x32xf32>
    %cst_70 = arith.constant dense<0.000000e+00> : vector<8xf32>
    %199 = vector.multi_reduction <add>, %198, %cst_70 [1] : vector<8x32xf32> to vector<8xf32>
    %200 = vector.shape_cast %199 : vector<8xf32> to vector<8x1xf32>
    %cst_71 = arith.constant 3.200000e+01 : f32
    %201 = vector.broadcast %cst_71 : f32 to vector<8x1xf32>
    %202 = arith.divf %200, %201 : vector<8x1xf32>
    %203 = vector.broadcast %202 : vector<8x1xf32> to vector<8x32xf32>
    %204 = arith.subf %198, %203 : vector<8x32xf32>
    %205 = arith.mulf %204, %204 : vector<8x32xf32>
    %cst_72 = arith.constant dense<0.000000e+00> : vector<8xf32>
    %206 = vector.multi_reduction <add>, %205, %cst_72 [1] : vector<8x32xf32> to vector<8xf32>
    %207 = vector.shape_cast %206 : vector<8xf32> to vector<8x1xf32>
    %cst_73 = arith.constant 3.200000e+01 : f32
    %208 = vector.broadcast %cst_73 : f32 to vector<8x1xf32>
    %209 = arith.divf %207, %208 : vector<8x1xf32>
    %210 = vector.broadcast %202 : vector<8x1xf32> to vector<8x32xf32>
    %211 = arith.subf %198, %210 : vector<8x32xf32>
    %cst_74 = arith.constant 9.99999974E-6 : f32
    %212 = vector.broadcast %cst_74 : f32 to vector<8x1xf32>
    %213 = arith.addf %209, %212 : vector<8x1xf32>
    %214 = math.rsqrt %213 : vector<8x1xf32>
    %215 = vector.broadcast %214 : vector<8x1xf32> to vector<8x32xf32>
    %216 = arith.mulf %211, %215 : vector<8x32xf32>
    %217 = arith.truncf %216 : vector<8x32xf32> to vector<8x32xbf16>
    %c1_75 = arith.constant 1 : index
    %c0_76 = arith.constant 0 : index
    %c0_77 = arith.constant 0 : index
    %218 = vector.load %arg8[%c1_75, %c0_76, %c0_77] : memref<2x32x128xbf16, #tpu.memory_space<vmem>>, vector<1x32x128xbf16>
    %219 = vector.shape_cast %218 : vector<1x32x128xbf16> to vector<32x128xbf16>
    %cst_78 = arith.constant dense<0.000000e+00> : vector<8x128xf32>
    %220 = tpu.matmul %217, %219, %cst_78 {dimension_numbers = #tpu.dot_dimension_numbers<[1], [0], [0], [1], [0, 0, 1, 1], [], []>} : vector<8x32xbf16>, vector<32x128xbf16>, vector<8x128xf32> -> vector<8x128xf32>
    %cst_79 = arith.constant 5.000000e-01 : f32
    %221 = vector.broadcast %cst_79 : f32 to vector<8x128xf32>
    %222 = arith.mulf %221, %220 : vector<8x128xf32>
    %cst_80 = arith.constant 0.707106769 : f32
    %223 = vector.broadcast %cst_80 : f32 to vector<8x128xf32>
    %224 = arith.mulf %220, %223 : vector<8x128xf32>
    %225 = math.absf %224 : vector<8x128xf32>
    %cst_81 = arith.constant 0.327591091 : f32
    %226 = vector.broadcast %cst_81 : f32 to vector<8x128xf32>
    %227 = arith.mulf %226, %225 : vector<8x128xf32>
    %cst_82 = arith.constant 1.000000e+00 : f32
    %228 = vector.broadcast %cst_82 : f32 to vector<8x128xf32>
    %229 = arith.addf %228, %227 : vector<8x128xf32>
    %cst_83 = arith.constant 1.000000e+00 : f32
    %230 = vector.broadcast %cst_83 : f32 to vector<8x128xf32>
    %231 = arith.divf %230, %229 : vector<8x128xf32>
    %cst_84 = arith.constant 1.06140542 : f32
    %232 = vector.broadcast %cst_84 : f32 to vector<8x128xf32>
    %233 = arith.mulf %232, %231 : vector<8x128xf32>
    %cst_85 = arith.constant -1.45315206 : f32
    %234 = vector.broadcast %cst_85 : f32 to vector<8x128xf32>
    %235 = arith.addf %233, %234 : vector<8x128xf32>
    %236 = arith.mulf %235, %231 : vector<8x128xf32>
    %cst_86 = arith.constant 1.42141378 : f32
    %237 = vector.broadcast %cst_86 : f32 to vector<8x128xf32>
    %238 = arith.addf %236, %237 : vector<8x128xf32>
    %239 = arith.mulf %238, %231 : vector<8x128xf32>
    %cst_87 = arith.constant -0.284496725 : f32
    %240 = vector.broadcast %cst_87 : f32 to vector<8x128xf32>
    %241 = arith.addf %239, %240 : vector<8x128xf32>
    %242 = arith.mulf %241, %231 : vector<8x128xf32>
    %cst_88 = arith.constant 0.254829586 : f32
    %243 = vector.broadcast %cst_88 : f32 to vector<8x128xf32>
    %244 = arith.addf %242, %243 : vector<8x128xf32>
    %245 = arith.mulf %244, %231 : vector<8x128xf32>
    %cst_89 = arith.constant 0.000000e+00 : f32
    %246 = vector.broadcast %cst_89 : f32 to vector<8x128xf32>
    %247 = arith.subf %246, %225 : vector<8x128xf32>
    %248 = arith.mulf %247, %225 : vector<8x128xf32>
    %249 = math.exp %248 : vector<8x128xf32>
    %250 = arith.mulf %245, %249 : vector<8x128xf32>
    %cst_90 = arith.constant 1.000000e+00 : f32
    %251 = vector.broadcast %cst_90 : f32 to vector<8x128xf32>
    %252 = arith.subf %251, %250 : vector<8x128xf32>
    %cst_91 = arith.constant 0.000000e+00 : f32
    %253 = vector.broadcast %cst_91 : f32 to vector<8x128xf32>
    %254 = arith.cmpf oge, %224, %253 : vector<8x128xf32>
    %cst_92 = arith.constant 0.000000e+00 : f32
    %255 = vector.broadcast %cst_92 : f32 to vector<8x128xf32>
    %256 = arith.subf %255, %252 : vector<8x128xf32>
    %257 = arith.select %254, %252, %256 : vector<8x128xi1>, vector<8x128xf32>
    %cst_93 = arith.constant 1.000000e+00 : f32
    %258 = vector.broadcast %cst_93 : f32 to vector<8x128xf32>
    %259 = arith.addf %258, %257 : vector<8x128xf32>
    %260 = arith.mulf %222, %259 : vector<8x128xf32>
    %261 = arith.truncf %260 : vector<8x128xf32> to vector<8x128xbf16>
    %c1_94 = arith.constant 1 : index
    %c0_95 = arith.constant 0 : index
    %c0_96 = arith.constant 0 : index
    %262 = vector.load %arg9[%c1_94, %c0_95, %c0_96] : memref<2x128x32xbf16, #tpu.memory_space<vmem>>, vector<1x128x32xbf16>
    %263 = vector.shape_cast %262 : vector<1x128x32xbf16> to vector<128x32xbf16>
    %cst_97 = arith.constant dense<0.000000e+00> : vector<8x32xf32>
    %264 = tpu.matmul %261, %263, %cst_97 {dimension_numbers = #tpu.dot_dimension_numbers<[1], [0], [0], [1], [0, 0, 1, 1], [], []>} : vector<8x128xbf16>, vector<128x32xbf16>, vector<8x32xf32> -> vector<8x32xf32>
    %265 = arith.addf %198, %264 : vector<8x32xf32>
    %cst_98 = arith.constant dense<0.000000e+00> : vector<8xf32>
    %266 = vector.multi_reduction <add>, %265, %cst_98 [1] : vector<8x32xf32> to vector<8xf32>
    %267 = vector.shape_cast %266 : vector<8xf32> to vector<8x1xf32>
    %cst_99 = arith.constant 3.200000e+01 : f32
    %268 = vector.broadcast %cst_99 : f32 to vector<8x1xf32>
    %269 = arith.divf %267, %268 : vector<8x1xf32>
    %270 = vector.broadcast %269 : vector<8x1xf32> to vector<8x32xf32>
    %271 = arith.subf %265, %270 : vector<8x32xf32>
    %272 = arith.mulf %271, %271 : vector<8x32xf32>
    %cst_100 = arith.constant dense<0.000000e+00> : vector<8xf32>
    %273 = vector.multi_reduction <add>, %272, %cst_100 [1] : vector<8x32xf32> to vector<8xf32>
    %274 = vector.shape_cast %273 : vector<8xf32> to vector<8x1xf32>
    %cst_101 = arith.constant 3.200000e+01 : f32
    %275 = vector.broadcast %cst_101 : f32 to vector<8x1xf32>
    %276 = arith.divf %274, %275 : vector<8x1xf32>
    %277 = vector.broadcast %269 : vector<8x1xf32> to vector<8x32xf32>
    %278 = arith.subf %265, %277 : vector<8x32xf32>
    %cst_102 = arith.constant 9.99999974E-6 : f32
    %279 = vector.broadcast %cst_102 : f32 to vector<8x1xf32>
    %280 = arith.addf %276, %279 : vector<8x1xf32>
    %281 = math.rsqrt %280 : vector<8x1xf32>
    %282 = vector.broadcast %281 : vector<8x1xf32> to vector<8x32xf32>
    %283 = arith.mulf %278, %282 : vector<8x32xf32>
    %284 = arith.truncf %283 : vector<8x32xf32> to vector<8x32xbf16>
    %c0_103 = arith.constant 0 : index
    %c0_104 = arith.constant 0 : index
    %285 = vector.load %arg10[%c0_103, %c0_104] : memref<128x32xbf16, #tpu.memory_space<vmem>>, vector<128x32xbf16>
    %cst_105 = arith.constant dense<0.000000e+00> : vector<8x128xf32>
    %286 = tpu.matmul %284, %285, %cst_105 {dimension_numbers = #tpu.dot_dimension_numbers<[1], [1], [0], [0], [0, 0, 1, 0], [], []>} : vector<8x32xbf16>, vector<128x32xbf16>, vector<8x128xf32> -> vector<8x128xf32>
    %c0_106 = arith.constant 0 : index
    %c0_107 = arith.constant 0 : index
    %287 = vector.load %arg11[%c0_106, %c0_107] : memref<8x128xf32, #tpu.memory_space<vmem>>, vector<8x128xf32>
    tpu.vector_store %arg11[%c0_106, %c0_107], %286 {strides = array<i32>} : memref<8x128xf32, #tpu.memory_space<vmem>>, vector<8x128xf32>,
    return
  }
  func.func @transform_0(%arg0: i32) -> (i32, i32) {
    %c0_i32 = arith.constant 0 : i32
    %c0_i32_0 = arith.constant 0 : i32
    return %arg0, %c0_i32 : i32, i32
  }
  func.func @transform_1(%arg0: i32) -> (i32, i32) {
    %c0_i32 = arith.constant 0 : i32
    %c0_i32_0 = arith.constant 0 : i32
    %c0_i32_1 = arith.constant 0 : i32
    return %c0_i32, %c0_i32_0 : i32, i32
  }
  func.func @transform_2(%arg0: i32) -> (i32, i32) {
    %c0_i32 = arith.constant 0 : i32
    %c0_i32_0 = arith.constant 0 : i32
    %c0_i32_1 = arith.constant 0 : i32
    return %c0_i32, %c0_i32_0 : i32, i32
  }
  func.func @transform_3(%arg0: i32) -> (i32, i32) {
    %c0_i32 = arith.constant 0 : i32
    %c0_i32_0 = arith.constant 0 : i32
    %c0_i32_1 = arith.constant 0 : i32
    return %c0_i32, %c0_i32_0 : i32, i32
  }
  func.func @transform_4(%arg0: i32) -> (i32, i32) {
    %c0_i32 = arith.constant 0 : i32
    %c0_i32_0 = arith.constant 0 : i32
    %c0_i32_1 = arith.constant 0 : i32
    return %c0_i32, %c0_i32_0 : i32, i32
  }
  func.func @transform_5(%arg0: i32) -> (i32, i32, i32) {
    %c0_i32 = arith.constant 0 : i32
    %c0_i32_0 = arith.constant 0 : i32
    %c0_i32_1 = arith.constant 0 : i32
    %c0_i32_2 = arith.constant 0 : i32
    return %c0_i32, %c0_i32_0, %c0_i32_1 : i32, i32, i32
  }
  func.func @transform_6(%arg0: i32) -> (i32, i32, i32) {
    %c0_i32 = arith.constant 0 : i32
    %c0_i32_0 = arith.constant 0 : i32
    %c0_i32_1 = arith.constant 0 : i32
    %c0_i32_2 = arith.constant 0 : i32
    return %c0_i32, %c0_i32_0, %c0_i32_1 : i32, i32, i32
  }
  func.func @transform_7(%arg0: i32) -> (i32, i32, i32) {
    %c0_i32 = arith.constant 0 : i32
    %c0_i32_0 = arith.constant 0 : i32
    %c0_i32_1 = arith.constant 0 : i32
    %c0_i32_2 = arith.constant 0 : i32
    return %c0_i32, %c0_i32_0, %c0_i32_1 : i32, i32, i32
  }
  func.func @transform_8(%arg0: i32) -> (i32, i32, i32) {
    %c0_i32 = arith.constant 0 : i32
    %c0_i32_0 = arith.constant 0 : i32
    %c0_i32_1 = arith.constant 0 : i32
    %c0_i32_2 = arith.constant 0 : i32
    return %c0_i32, %c0_i32_0, %c0_i32_1 : i32, i32, i32
  }
  func.func @transform_9(%arg0: i32) -> (i32, i32) {
    %c0_i32 = arith.constant 0 : i32
    %c0_i32_0 = arith.constant 0 : i32
    %c0_i32_1 = arith.constant 0 : i32
    return %c0_i32, %c0_i32_0 : i32, i32
  }
  func.func @transform_10(%arg0: i32) -> (i32, i32) {
    %c0_i32 = arith.constant 0 : i32
    %c0_i32_0 = arith.constant 0 : i32
    return %arg0, %c0_i32 : i32, i32
  }
}

</mosaic_0001>

<llo_original>
// kernel: le.11
$region0: #{le.11}
  %s0 = inlined_call_operand.vmem [shape: s32[4,8], index: 0, kind: input, shape index: {}]
  %s1 = inlined_call_operand.vmem [shape: s32[32], index: 1, kind: output, shape index: {}]
  $region1: #{le.11} parent=0
    #allocation0 [shape = 'u8[4096]{0}', space=vmem, size = 0x1000, scoped, tag = 'scoped mem for output reshape']
    #allocation1 [shape = 'u8[4096]{0}', space=vmem, size = 0x1000, scoped, tag = 'scoped mem for input reshape']
    %s3 = sshllo.u32 0, 4
    %v4 = vld [vmem:[%s0] sm:%s3]
    %5 = vst [vmem:[#allocation1] sm:%s3] %v4
    %v6 = vld [vmem:[#allocation1] sm:$0x1]
    %vm7 = vcmask 64512
    %8 = vst.msk [vmem:[#allocation0] sm:$0x1] %vm7, %v6
    %s9 = scalar_lea.vmem [#allocation1], 3
    %v10 = vld [vmem:[%s9] sm:$0x1]
    %11 = vrot.lane.b32.xlu0 %v10, 24
    %v12 = vpop.permute.xlu0 %11
    %vm13 = vcmask 261312
    %14 = vst.msk [vmem:[#allocation0] sm:$0x1] %vm13, %v12
    %s15 = scalar_lea.vmem [#allocation1], 2
    %v16 = vld [vmem:[%s15] sm:$0x1]
    %17 = vrot.lane.b32.xlu0 %v16, 16
    %v18 = vpop.permute.xlu0 %17
    %vm19 = vcmask 195712
    %20 = vst.msk [vmem:[#allocation0] sm:$0x1] %vm19, %v18
    %s21 = scalar_lea.vmem [#allocation1], 1
    %v22 = vld [vmem:[%s21] sm:$0x1]
    %23 = vrot.lane.b32.xlu0 %v22, 8
    %v24 = vpop.permute.xlu0 %23
    %vm25 = vcmask 130112
    %26 = vst.msk [vmem:[#allocation0] sm:$0x1] %vm25, %v24
    %s28 = sshllo.u32 0, 1
    %v30 = vld [vmem:[#allocation0] sm:%s28]
    %s31 = sshllo.u32 0, 1
    %32 = vst [vmem:[%s1] sm:%s31] %v30

// kernel: nanogpt_forward.1
$region0: #{nanogpt_forward.1}
  #allocation0 [shape = 'u32[]', space=smem, size = 0x4, offset = 0x4, fixed_abs, tag = 'smem constant byte address 0x4 - core index']
  #allocation1 [shape = 'u32[144,128]{1,0:T(1,128)}', space=vmem, size = 0x12000, scoped, tag = 'internal scratch']
  %s0 = inlined_call_operand.vmem [shape: s32[16,1], index: 0, kind: input, shape index: {}]
  %s1 = inlined_call_operand.vmem [shape: bf16[128,32], index: 1, kind: input, shape index: {}]
  %s2 = inlined_call_operand.vmem [shape: f32[8,32], index: 2, kind: input, shape index: {}]
  %s3 = inlined_call_operand.vmem [shape: f32[32,32], index: 3, kind: input, shape index: {}]
  %s4 = inlined_call_operand.vmem [shape: f32[32,8], index: 4, kind: input, shape index: {}]
  %s5 = inlined_call_operand.vmem [shape: bf16[2,32,96], index: 5, kind: input, shape index: {}]
  %s6 = inlined_call_operand.vmem [shape: bf16[2,32,32], index: 6, kind: input, shape index: {}]
  %s7 = inlined_call_operand.vmem [shape: bf16[2,32,128], index: 7, kind: input, shape index: {}]
  %s8 = inlined_call_operand.vmem [shape: bf16[2,128,32], index: 8, kind: input, shape index: {}]
  %s9 = inlined_call_operand.vmem [shape: bf16[128,32], index: 9, kind: input, shape index: {}]
  %s10 = inlined_call_operand.hbm [shape: f32[16,128], index: 10, kind: output, shape index: {}]
  %s11 = sld [smem:[#allocation0]]
  $region73: #{nanogpt_forward.1} parent=0
    _
  %s13 = ssub.s32 1, %s11
  %s14 = scalar_select 0, %s13, %s11
  $region1: #{nanogpt_forward.1} parent=0
    #allocation2 [shape = 'u8[8192]{0}', space=vmem, size = 0x2000, scoped, tag = 'output window, operand 0']
    #allocation3 [shape = 's32[2]{0}', space=sflag, size = 0x8, scoped, tag = 'scoped memory for nanogpt_forward.1']
    %15 = vsyncpa [#allocation3], 0
    %s16 = scalar_lea.sflag [#allocation3], 1
    %17 = vsyncpa %s16, 0
    loop: start=0, step=1, limit=4
    $region2: #{nanogpt_forward.1} parent=1 // loop_pre_header
      _
    $region3: #{nanogpt_forward.1} parent=1 // loop_header
      %s19 = sphi 0, %s23
      %p20 = scmp.ge.s32.totalorder %s19, 4
      %s29 = sphi 0, %s31
      %s32 = sphi 0, %s29
      %s33 = sphi 0, %s32
      %s49 = sphi 0, %s33
      %s53 = sphi 0, %s53
      %s55 = sphi 0, %s53
      %s56 = sphi 0, %s55
      %s70 = sphi 0, %s56
      %s74 = sphi 0, %s74
      %s76 = sphi 0, %s74
      %s77 = sphi 0, %s76
      %s91 = sphi 0, %s77
      %s95 = sphi 0, %s95
      %s97 = sphi 0, %s95
      %s98 = sphi 0, %s97
      %s112 = sphi 0, %s98
      %s116 = sphi 0, %s116
      %s118 = sphi 0, %s116
      %s119 = sphi 0, %s118
      %s133 = sphi 0, %s119
      %s137 = sphi 0, %s137
      %s139 = sphi 0, %s137
      %s140 = sphi 0, %s139
      %s154 = sphi 0, %s140
      %s158 = sphi 0, %s158
      %s160 = sphi 0, %s158
      %s161 = sphi 0, %s160
      %s175 = sphi 0, %s161
      %s179 = sphi 0, %s179
      %s181 = sphi 0, %s179
      %s182 = sphi 0, %s181
      %s196 = sphi 0, %s182
      %s200 = sphi 0, %s200
      %s202 = sphi 0, %s200
      %s203 = sphi 0, %s202
      %s217 = sphi 0, %s203
      %s221 = sphi 0, %s221
      %s223 = sphi 0, %s221
      %s224 = sphi 0, %s223
      %s238 = sphi 0, %s224
      %s244 = sphi 0, %s246
      %s247 = sphi 0, %s244
      %s248 = sphi 0, %s247
      %s264 = sphi 0, %s248
    $region4: #{nanogpt_forward.1} parent=1 // loop_header_branch
      %22 = sbr.rel (%p20) target = $region8
    $region5: #{nanogpt_forward.1} parent=1 // loop_body
      %s24 = ssub.s32 %s19, 1
      %s25 = ssub.s32 %s19, 2
      %s26 = sadd.s32 %s19, 1
      %s27 = ssub.s32 %s19, %s26
      %p28 = scmp.eq.s32.totalorder %s27, 0
      %s30 = sadd.s32 %s29, 1
      %s31 = scalar_select %p28, %s29, %s30
      %p34 = pneg %p28
      %p35 = scmp.eq.s32.totalorder %s19, 1
      %p36 = por %p34, %p35
      %p37 = scmp.ne.s32.totalorder %s29, %s32
      %p38 = scmp.eq.s32.totalorder %s19, 0
      %p39 = por %p37, %p38
      %p40 = scmp.ne.s32.totalorder %s29, %s32
      %p41 = scmp.eq.s32.totalorder %s24, 1
      %p42 = por %p40, %p41
      %p43 = scmp.ne.s32.totalorder %s32, %s33
      %p44 = scmp.eq.s32.totalorder %s24, 0
      %p45 = por %p43, %p44
      %p46 = scmp.ne.s32.totalorder %s32, %s33
      %p47 = scmp.eq.s32.totalorder %s25, 1
      %p48 = por %p46, %p47
      %p50 = scmp.ne.s32.totalorder %s33, %s49
      %p51 = scmp.eq.s32.totalorder %s25, 0
      %p52 = por %p50, %p51
      %s54 = sadd.s32 %s53, 1
      %p57 = scmp.eq.s32.totalorder %s19, 1
      %p58 = scmp.ne.s32.totalorder %s53, %s55
      %p59 = scmp.eq.s32.totalorder %s19, 0
      %p60 = por %p58, %p59
      %p61 = scmp.ne.s32.totalorder %s53, %s55
      %p62 = scmp.eq.s32.totalorder %s24, 1
      %p63 = por %p61, %p62
      %p64 = scmp.ne.s32.totalorder %s55, %s56
      %p65 = scmp.eq.s32.totalorder %s24, 0
      %p66 = por %p64, %p65
      %p67 = scmp.ne.s32.totalorder %s55, %s56
      %p68 = scmp.eq.s32.totalorder %s25, 1
      %p69 = por %p67, %p68
      %p71 = scmp.ne.s32.totalorder %s56, %s70
      %p72 = scmp.eq.s32.totalorder %s25, 0
      %p73 = por %p71, %p72
      %s75 = sadd.s32 %s74, 1
      %p78 = scmp.eq.s32.totalorder %s19, 1
      %p79 = scmp.ne.s32.totalorder %s74, %s76
      %p80 = scmp.eq.s32.totalorder %s19, 0
      %p81 = por %p79, %p80
      %p82 = scmp.ne.s32.totalorder %s74, %s76
      %p83 = scmp.eq.s32.totalorder %s24, 1
      %p84 = por %p82, %p83
      %p85 = scmp.ne.s32.totalorder %s76, %s77
      %p86 = scmp.eq.s32.totalorder %s24, 0
      %p87 = por %p85, %p86
      %p88 = scmp.ne.s32.totalorder %s76, %s77
      %p89 = scmp.eq.s32.totalorder %s25, 1
      %p90 = por %p88, %p89
      %p92 = scmp.ne.s32.totalorder %s77, %s91
      %p93 = scmp.eq.s32.totalorder %s25, 0
      %p94 = por %p92, %p93
      %s96 = sadd.s32 %s95, 1
      %p99 = scmp.eq.s32.totalorder %s19, 1
      %p100 = scmp.ne.s32.totalorder %s95, %s97
      %p101 = scmp.eq.s32.totalorder %s19, 0
      %p102 = por %p100, %p101
      %p103 = scmp.ne.s32.totalorder %s95, %s97
      %p104 = scmp.eq.s32.totalorder %s24, 1
      %p105 = por %p103, %p104
      %p106 = scmp.ne.s32.totalorder %s97, %s98
      %p107 = scmp.eq.s32.totalorder %s24, 0
      %p108 = por %p106, %p107
      %p109 = scmp.ne.s32.totalorder %s97, %s98
      %p110 = scmp.eq.s32.totalorder %s25, 1
      %p111 = por %p109, %p110
      %p113 = scmp.ne.s32.totalorder %s98, %s112
      %p114 = scmp.eq.s32.totalorder %s25, 0
      %p115 = por %p113, %p114
      %s117 = sadd.s32 %s116, 1
      %p120 = scmp.eq.s32.totalorder %s19, 1
      %p121 = scmp.ne.s32.totalorder %s116, %s118
      %p122 = scmp.eq.s32.totalorder %s19, 0
      %p123 = por %p121, %p122
      %p124 = scmp.ne.s32.totalorder %s116, %s118
      %p125 = scmp.eq.s32.totalorder %s24, 1
      %p126 = por %p124, %p125
      %p127 = scmp.ne.s32.totalorder %s118, %s119
      %p128 = scmp.eq.s32.totalorder %s24, 0
      %p129 = por %p127, %p128
      %p130 = scmp.ne.s32.totalorder %s118, %s119
      %p131 = scmp.eq.s32.totalorder %s25, 1
      %p132 = por %p130, %p131
      %p134 = scmp.ne.s32.totalorder %s119, %s133
      %p135 = scmp.eq.s32.totalorder %s25, 0
      %p136 = por %p134, %p135
      %s138 = sadd.s32 %s137, 1
      %p141 = scmp.eq.s32.totalorder %s19, 1
      %p142 = scmp.ne.s32.totalorder %s137, %s139
      %p143 = scmp.eq.s32.totalorder %s19, 0
      %p144 = por %p142, %p143
      %p145 = scmp.ne.s32.totalorder %s137, %s139
      %p146 = scmp.eq.s32.totalorder %s24, 1
      %p147 = por %p145, %p146
      %p148 = scmp.ne.s32.totalorder %s139, %s140
      %p149 = scmp.eq.s32.totalorder %s24, 0
      %p150 = por %p148, %p149
      %p151 = scmp.ne.s32.totalorder %s139, %s140
      %p152 = scmp.eq.s32.totalorder %s25, 1
      %p153 = por %p151, %p152
      %p155 = scmp.ne.s32.totalorder %s140, %s154
      %p156 = scmp.eq.s32.totalorder %s25, 0
      %p157 = por %p155, %p156
      %s159 = sadd.s32 %s158, 1
      %p162 = scmp.eq.s32.totalorder %s19, 1
      %p163 = scmp.ne.s32.totalorder %s158, %s160
      %p164 = scmp.eq.s32.totalorder %s19, 0
      %p165 = por %p163, %p164
      %p166 = scmp.ne.s32.totalorder %s158, %s160
      %p167 = scmp.eq.s32.totalorder %s24, 1
      %p168 = por %p166, %p167
      %p169 = scmp.ne.s32.totalorder %s160, %s161
      %p170 = scmp.eq.s32.totalorder %s24, 0
      %p171 = por %p169, %p170
      %p172 = scmp.ne.s32.totalorder %s160, %s161
      %p173 = scmp.eq.s32.totalorder %s25, 1
      %p174 = por %p172, %p173
      %p176 = scmp.ne.s32.totalorder %s161, %s175
      %p177 = scmp.eq.s32.totalorder %s25, 0
      %p178 = por %p176, %p177
      %s180 = sadd.s32 %s179, 1
      %p183 = scmp.eq.s32.totalorder %s19, 1
      %p184 = scmp.ne.s32.totalorder %s179, %s181
      %p185 = scmp.eq.s32.totalorder %s19, 0
      %p186 = por %p184, %p185
      %p187 = scmp.ne.s32.totalorder %s179, %s181
      %p188 = scmp.eq.s32.totalorder %s24, 1
      %p189 = por %p187, %p188
      %p190 = scmp.ne.s32.totalorder %s181, %s182
      %p191 = scmp.eq.s32.totalorder %s24, 0
      %p192 = por %p190, %p191
      %p193 = scmp.ne.s32.totalorder %s181, %s182
      %p194 = scmp.eq.s32.totalorder %s25, 1
      %p195 = por %p193, %p194
      %p197 = scmp.ne.s32.totalorder %s182, %s196
      %p198 = scmp.eq.s32.totalorder %s25, 0
      %p199 = por %p197, %p198
      %s201 = sadd.s32 %s200, 1
      %p204 = scmp.eq.s32.totalorder %s19, 1
      %p205 = scmp.ne.s32.totalorder %s200, %s202
      %p206 = scmp.eq.s32.totalorder %s19, 0
      %p207 = por %p205, %p206
      %p208 = scmp.ne.s32.totalorder %s200, %s202
      %p209 = scmp.eq.s32.totalorder %s24, 1
      %p210 = por %p208, %p209
      %p211 = scmp.ne.s32.totalorder %s202, %s203
      %p212 = scmp.eq.s32.totalorder %s24, 0
      %p213 = por %p211, %p212
      %p214 = scmp.ne.s32.totalorder %s202, %s203
      %p215 = scmp.eq.s32.totalorder %s25, 1
      %p216 = por %p214, %p215
      %p218 = scmp.ne.s32.totalorder %s203, %s217
      %p219 = scmp.eq.s32.totalorder %s25, 0
      %p220 = por %p218, %p219
      %s222 = sadd.s32 %s221, 1
      %p225 = scmp.eq.s32.totalorder %s19, 1
      %p226 = scmp.ne.s32.totalorder %s221, %s223
      %p227 = scmp.eq.s32.totalorder %s19, 0
      %p228 = por %p226, %p227
      %p229 = scmp.ne.s32.totalorder %s221, %s223
      %p230 = scmp.eq.s32.totalorder %s24, 1
      %p231 = por %p229, %p230
      %p232 = scmp.ne.s32.totalorder %s223, %s224
      %p233 = scmp.eq.s32.totalorder %s24, 0
      %p234 = por %p232, %p233
      %p235 = scmp.ne.s32.totalorder %s223, %s224
      %p236 = scmp.eq.s32.totalorder %s25, 1
      %p237 = por %p235, %p236
      %p239 = scmp.ne.s32.totalorder %s224, %s238
      %p240 = scmp.eq.s32.totalorder %s25, 0
      %p241 = por %p239, %p240
      %s242 = ssub.s32 %s19, %s26
      %p243 = scmp.eq.s32.totalorder %s242, 0
      %s245 = sadd.s32 %s244, 1
      %s246 = scalar_select %p243, %s244, %s245
      %p249 = pneg %p243
      %p250 = scmp.eq.s32.totalorder %s19, 1
      %p251 = por %p249, %p250
      %p252 = scmp.ne.s32.totalorder %s244, %s247
      %p253 = scmp.eq.s32.totalorder %s19, 0
      %p254 = por %p252, %p253
      %p255 = scmp.ne.s32.totalorder %s244, %s247
      %p256 = scmp.eq.s32.totalorder %s24, 1
      %p257 = por %p255, %p256
      %p258 = scmp.ne.s32.totalorder %s247, %s248
      %p259 = scmp.eq.s32.totalorder %s24, 0
      %p260 = por %p258, %p259
      %p261 = scmp.ne.s32.totalorder %s247, %s248
      %p262 = scmp.eq.s32.totalorder %s25, 1
      %p263 = por %p261, %p262
      %p265 = scmp.ne.s32.totalorder %s248, %s264
      %p266 = scmp.eq.s32.totalorder %s25, 0
      %p267 = por %p265, %p266
      %p268 = scmp.le.s32.totalorder 1, %s19
      %p269 = scmp.lt.s32.totalorder %s19, 3
      %p270 = pnand %p268, %p269
      %p271 = pneg %p270
      // Predicated region
      $region9: #{nanogpt_forward.1} parent=5 // pred_check
        _
      $region10: #{nanogpt_forward.1} parent=5 // pred_check_branch
        %273 = sbr.rel (%p270) target = $region12
      $region11: #{nanogpt_forward.1} parent=5 // pred_region
        %s274 = ssub.s32 %s19, 1
        // Predicated region
        $region13: #{nanogpt_forward.1} parent=11 // pred_check
          %p275 = pneg %p66
        $region14: #{nanogpt_forward.1} parent=11 // pred_check_branch
          %277 = sbr.rel (%p275) target = $region16
        $region15: #{nanogpt_forward.1} parent=11 // pred_region
          _
        $region16: #{nanogpt_forward.1} parent=11 // pred_fallthru
          _
        // Predicated region
        $region17: #{nanogpt_forward.1} parent=11 // pred_check
          %p278 = pneg %p87
        $region18: #{nanogpt_forward.1} parent=11 // pred_check_branch
          %280 = sbr.rel (%p278) target = $region20
        $region19: #{nanogpt_forward.1} parent=11 // pred_region
          _
        $region20: #{nanogpt_forward.1} parent=11 // pred_fallthru
          _
        // Predicated region
        $region21: #{nanogpt_forward.1} parent=11 // pred_check
          %p281 = pneg %p108
        $region22: #{nanogpt_forward.1} parent=11 // pred_check_branch
          %283 = sbr.rel (%p281) target = $region24
        $region23: #{nanogpt_forward.1} parent=11 // pred_region
          _
        $region24: #{nanogpt_forward.1} parent=11 // pred_fallthru
          _
        // Predicated region
        $region25: #{nanogpt_forward.1} parent=11 // pred_check
          %p284 = pneg %p129
        $region26: #{nanogpt_forward.1} parent=11 // pred_check_branch
          %286 = sbr.rel (%p284) target = $region28
        $region27: #{nanogpt_forward.1} parent=11 // pred_region
          _
        $region28: #{nanogpt_forward.1} parent=11 // pred_fallthru
          _
        // Predicated region
        $region29: #{nanogpt_forward.1} parent=11 // pred_check
          %p287 = pneg %p150
        $region30: #{nanogpt_forward.1} parent=11 // pred_check_branch
          %289 = sbr.rel (%p287) target = $region32
        $region31: #{nanogpt_forward.1} parent=11 // pred_region
          _
        $region32: #{nanogpt_forward.1} parent=11 // pred_fallthru
          _
        // Predicated region
        $region33: #{nanogpt_forward.1} parent=11 // pred_check
          %p290 = pneg %p171
        $region34: #{nanogpt_forward.1} parent=11 // pred_check_branch
          %292 = sbr.rel (%p290) target = $region36
        $region35: #{nanogpt_forward.1} parent=11 // pred_region
          _
        $region36: #{nanogpt_forward.1} parent=11 // pred_fallthru
          _
        // Predicated region
        $region37: #{nanogpt_forward.1} parent=11 // pred_check
          %p293 = pneg %p192
        $region38: #{nanogpt_forward.1} parent=11 // pred_check_branch
          %295 = sbr.rel (%p293) target = $region40
        $region39: #{nanogpt_forward.1} parent=11 // pred_region
          _
        $region40: #{nanogpt_forward.1} parent=11 // pred_fallthru
          _
        // Predicated region
        $region41: #{nanogpt_forward.1} parent=11 // pred_check
          %p296 = pneg %p213
        $region42: #{nanogpt_forward.1} parent=11 // pred_check_branch
          %298 = sbr.rel (%p296) target = $region44
        $region43: #{nanogpt_forward.1} parent=11 // pred_region
          _
        $region44: #{nanogpt_forward.1} parent=11 // pred_fallthru
          _
        // Predicated region
        $region45: #{nanogpt_forward.1} parent=11 // pred_check
          %p299 = pneg %p234
        $region46: #{nanogpt_forward.1} parent=11 // pred_check_branch
          %301 = sbr.rel (%p299) target = $region48
        $region47: #{nanogpt_forward.1} parent=11 // pred_region
          _
        $region48: #{nanogpt_forward.1} parent=11 // pred_fallthru
          _
      $region12: #{nanogpt_forward.1} parent=5 // pred_fallthru
        _
      %p302 = scmp.lt.s32.totalorder %s19, 2
      // Predicated region
      $region49: #{nanogpt_forward.1} parent=5 // pred_check
        %p303 = pneg %p302
      $region50: #{nanogpt_forward.1} parent=5 // pred_check_branch
        %305 = sbr.rel (%p303) target = $region52
      $region51: #{nanogpt_forward.1} parent=5 // pred_region
        // Predicated region
        $region53: #{nanogpt_forward.1} parent=51 // pred_check
          %p306 = pneg %p39
        $region54: #{nanogpt_forward.1} parent=51 // pred_check_branch
          %308 = sbr.rel (%p306) target = $region56
        $region55: #{nanogpt_forward.1} parent=51 // pred_region
          %p309 = scmp.lt.s32.totalorder %s19, 1
          %s310 = scalar_select %p309, %s19, 1
          %s311 = smul.addr %s310, 8
          %s312 = scalar_lea.vmem %s0, %s311
        $region56: #{nanogpt_forward.1} parent=51 // pred_fallthru
          _
      $region52: #{nanogpt_forward.1} parent=5 // pred_fallthru
        _
      %p313 = scmp.le.s32.totalorder 1, %s19
      %p314 = scmp.lt.s32.totalorder %s19, 3
      %p315 = pnand %p313, %p314
      %p316 = pneg %p315
      // Predicated region
      $region57: #{nanogpt_forward.1} parent=5 // pred_check
        _
      $region58: #{nanogpt_forward.1} parent=5 // pred_check_branch
        %318 = sbr.rel (%p315) target = $region60
      $region59: #{nanogpt_forward.1} parent=5 // pred_region
        %s319 = ssub.s32 %s19, 1
        %p320 = scmp.lt.s32.totalorder %s24, 1
        %s321 = scalar_select %p320, %s24, 1
        %s322 = smul.addr %s321, 8
        %s323 = scalar_lea.vmem %s0, %s322
        %p324 = pneg %p45
        %p325 = pneg %p42
        %p326 = pneg %p66
        %p327 = pneg %p63
        %p328 = pneg %p87
        %p329 = pneg %p84
        %p330 = pneg %p108
        %p331 = pneg %p105
        %p332 = pneg %p129
        %p333 = pneg %p126
        %p334 = pneg %p150
        %p335 = pneg %p147
        %p336 = pneg %p171
        %p337 = pneg %p168
        %p338 = pneg %p192
        %p339 = pneg %p189
        %p340 = pneg %p213
        %p341 = pneg %p210
        %p342 = pneg %p234
        %p343 = pneg %p231
        %p344 = pneg %p260
        %p345 = pneg %p257
        %s346 = sand.u32 %s247, 1
        %s347 = scalar_lea.sflag [#allocation3], %s346
        %s348 = sand.u32 %s247, 1
        %s349 = smul.addr %s348, 8
        %s350 = scalar_lea.vmem [#allocation2], %s349
        %p351 = scmp.lt.s32.totalorder %s24, 1
        %s352 = scalar_select %p351, %s24, 1
        %s353 = smul.addr %s352, 8
        %s354 = scalar_lea.vmem %s0, %s353
        %v356 = vld [vmem:[%s354] sm:$0xff]
        %v357 = vlaneseq
        %v358 = vand.u32 %v357, 127
        %359 = vset.pattern.permute.xlu0 0
        %360 = vperm.xlu0 %359, %v356
        %v361 = vpop.permute.xlu0 %360
        %vm362 = vcmp.eq.s32.totalorder %v358, %v361
        %v363 = vadd.s32 %v356, 64
        %364 = vset.pattern.permute.xlu0 0
        %365 = vperm.xlu0 %364, %v363
        %v366 = vpop.permute.xlu0 %365
        %vm367 = vcmp.eq.s32.totalorder %v358, %v366
        %vm368 = vmor %vm362, %vm367
        %v369 = vsel %vm368, 1, 0
        %v370 = vcvt.s32.f32 %v369
        %v371 = vpack.c.bf16 %v370, %v370
        %v372 = vld [vmem:[%s1] sm:$0xf]
        %v373 = vld [vmem:[%s1 + $0x4] sm:$0xf]
        %v374 = vld [vmem:[%s1 + $0x8] sm:$0xf]
        %v375 = vld [vmem:[%s1 + $0xc] sm:$0xf]
        %v376 = vld [vmem:[%s1 + $0x10] sm:$0xf]
        %v377 = vld [vmem:[%s1 + $0x14] sm:$0xf]
        %v378 = vld [vmem:[%s1 + $0x18] sm:$0xf]
        %v379 = vld [vmem:[%s1 + $0x1c] sm:$0xf]
        %v380 = vld [vmem:[%s1 + $0x20] sm:$0xf]
        %v381 = vld [vmem:[%s1 + $0x24] sm:$0xf]
        %v382 = vld [vmem:[%s1 + $0x28] sm:$0xf]
        %v383 = vld [vmem:[%s1 + $0x2c] sm:$0xf]
        %v384 = vld [vmem:[%s1 + $0x30] sm:$0xf]
        %v385 = vld [vmem:[%s1 + $0x34] sm:$0xf]
        %v386 = vld [vmem:[%s1 + $0x38] sm:$0xf]
        %v387 = vld [vmem:[%s1 + $0x3c] sm:$0xf]
        %v388 = vld [vmem:[%s2] sm:$0xff]
        %v405 = vunpack.c.l.b16 %v372
        %v406 = vunpack.c.l.b16 %v373
        %v407 = vunpack.c.l.b16 %v374
        %v408 = vunpack.c.l.b16 %v375
        %v409 = vunpack.c.l.b16 %v376
        %v410 = vunpack.c.l.b16 %v377
        %v411 = vunpack.c.l.b16 %v378
        %v412 = vunpack.c.l.b16 %v379
        %v413 = vunpack.c.l.b16 %v380
        %v414 = vunpack.c.l.b16 %v381
        %v415 = vunpack.c.l.b16 %v382
        %v416 = vunpack.c.l.b16 %v383
        %v417 = vunpack.c.l.b16 %v384
        %v418 = vunpack.c.l.b16 %v385
        %v419 = vunpack.c.l.b16 %v386
        %v420 = vunpack.c.l.b16 %v387
        %v421 = vpack.c.b16 %v406, %v405
        %v422 = vpack.c.b16 %v408, %v407
        %v423 = vpack.c.b16 %v410, %v409
        %v424 = vpack.c.b16 %v412, %v411
        %v425 = vpack.c.b16 %v414, %v413
        %v426 = vpack.c.b16 %v416, %v415
        %v427 = vpack.c.b16 %v418, %v417
        %v428 = vpack.c.b16 %v420, %v419
        %437 = vmatprep.subr.bf16.mxu0 0
        %438 = vmatpush1.bf16.msra.mxu0 %v421
        %439 = vmatprep.subr.bf16.mxu0 0
        %440 = vmatpush1.bf16.msra.mxu0 %v422
        %441 = vmatprep.subr.bf16.mxu0 0
        %442 = vmatpush1.bf16.msra.mxu0 %v423
        %443 = vmatprep.subr.bf16.mxu0 0
        %444 = vmatpush1.bf16.msra.mxu0 %v424
        %445 = vmatprep.subr.bf16.mxu0 0
        %446 = vmatpush1.bf16.msra.mxu0 %v425
        %447 = vmatprep.subr.bf16.mxu0 0
        %448 = vmatpush1.bf16.msra.mxu0 %v426
        %449 = vmatprep.subr.bf16.mxu0 0
        %450 = vmatpush1.bf16.msra.mxu0 %v427
        %451 = vmatprep.subr.bf16.mxu0 0
        %452 = vmatpush1.bf16.msra.mxu0 %v428
        %453 = vmatprep.subr.bf16.mxu0 0
        %454 = vmatpush1.bf16.msra.mxu0 0
        %455 = vmatprep.subr.bf16.mxu0 0
        %456 = vmatpush1.bf16.msra.mxu0 0
        %457 = vmatprep.subr.bf16.mxu0 0
        %458 = vmatpush1.bf16.msra.mxu0 0
        %459 = vmatprep.subr.bf16.mxu0 0
        %460 = vmatpush1.bf16.msra.mxu0 0
        %461 = vmatprep.subr.bf16.mxu0 0
        %462 = vmatpush1.bf16.msra.mxu0 0
        %463 = vmatprep.subr.bf16.mxu0 0
        %464 = vmatpush1.bf16.msra.mxu0 0
        %465 = vmatprep.subr.bf16.mxu0 0
        %466 = vmatpush1.bf16.msra.mxu0 0
        %467 = vmatprep.subr.bf16.mxu0 0
        %468 = vmatpush1.bf16.msra.mxu0 0
        %469 = vmatprep.mubr.bf16.mxu0 0
        %470 = vmatmul.mubr.bf16.gmra.mrb[0].mxu0 %v371
        %v471 = vpop.f32.mrb[0].mxu0
        %v472 = vadd.f32 %v388, %v471
        %v473 = vpop.f32.mrb[0].mxu0
        %v474 = vpop.f32.mrb[0].mxu0
        %v475 = vpop.f32.mrb[0].mxu0
        %476 = vdwg.mxu0
        %v477 = vld [vmem:[%s3] sm:$0xff]
        %v478 = vld [vmem:[%s3 + $0x8] sm:$0xff]
        %v479 = vld [vmem:[%s3 + $0x10] sm:$0xff]
        %v480 = vld [vmem:[%s3 + $0x18] sm:$0xff]
        %v481 = vld [vmem:[%s4] sm:$0xff]
        %v482 = vld [vmem:[%s4 + $0x8] sm:$0xff]
        %v483 = vld [vmem:[%s4 + $0x10] sm:$0xff]
        %v484 = vld [vmem:[%s4 + $0x18] sm:$0xff]
        %vm485 = vcmask 261120
        %v486 = vsel %vm485, %v472, 0.0
        %487 = vadd.xlane.f32.xlu0 %v486
        %v488 = vpop.xlane.xlu0 %487
        %v489 = vrcp.pop 32.0
        %v490 = vmul.f32 %v488, %v489
        %v491 = vsub.f32 %v472, %v490
        %v492 = vmul.f32 %v491, %v491
        %v493 = vsel %vm485, %v492, 0.0
        %494 = vadd.xlane.f32.xlu0 %v493
        %v495 = vpop.xlane.xlu0 %494
        %v496 = vmul.f32 %v495, %v489
        %v497 = vadd.f32 %v496, 1e-05
        %v498 = vrsqrt.pop %v497
        %v499 = vmul.f32 %v491, %v498
        %v500 = vpack.c.bf16 %v499, %v499
        %v501 = vld [vmem:[%s5] sm:$0xf]
        %v502 = vld [vmem:[%s5 + $0x4] sm:$0xf]
        %v503 = vld [vmem:[%s5 + $0x8] sm:$0xf]
        %v504 = vld [vmem:[%s5 + $0xc] sm:$0xf]
        %v509 = vunpack.c.l.b16 %v501
        %v510 = vunpack.c.l.b16 %v502
        %v511 = vunpack.c.l.b16 %v503
        %v512 = vunpack.c.l.b16 %v504
        %v513 = vpack.c.b16 %v510, %v509
        %v514 = vpack.c.b16 %v512, %v511
        %v518 = vsel %vm485, %v500, 0
        %520 = vmatprep.subr.bf16.mxu0 0
        %521 = vmatpush1.bf16.msra.mxu0 %v513
        %522 = vmatprep.subr.bf16.mxu0 0
        %523 = vmatpush1.bf16.msra.mxu0 %v514
        %524 = vmatprep.subr.bf16.mxu0 0
        %525 = vmatpush1.bf16.msra.mxu0 0
        %526 = vmatprep.subr.bf16.mxu0 0
        %527 = vmatpush1.bf16.msra.mxu0 0
        %528 = vmatprep.subr.bf16.mxu0 0
        %529 = vmatpush1.bf16.msra.mxu0 0
        %530 = vmatprep.subr.bf16.mxu0 0
        %531 = vmatpush1.bf16.msra.mxu0 0
        %532 = vmatprep.subr.bf16.mxu0 0
        %533 = vmatpush1.bf16.msra.mxu0 0
        %534 = vmatprep.subr.bf16.mxu0 0
        %535 = vmatpush1.bf16.msra.mxu0 0
        %536 = vmatprep.subr.bf16.mxu0 0
        %537 = vmatpush1.bf16.msra.mxu0 0
        %538 = vmatprep.subr.bf16.mxu0 0
        %539 = vmatpush1.bf16.msra.mxu0 0
        %540 = vmatprep.subr.bf16.mxu0 0
        %541 = vmatpush1.bf16.msra.mxu0 0
        %542 = vmatprep.subr.bf16.mxu0 0
        %543 = vmatpush1.bf16.msra.mxu0 0
        %544 = vmatprep.subr.bf16.mxu0 0
        %545 = vmatpush1.bf16.msra.mxu0 0
        %546 = vmatprep.subr.bf16.mxu0 0
        %547 = vmatpush1.bf16.msra.mxu0 0
        %548 = vmatprep.subr.bf16.mxu0 0
        %549 = vmatpush1.bf16.msra.mxu0 0
        %550 = vmatprep.subr.bf16.mxu0 0
        %551 = vmatpush1.bf16.msra.mxu0 0
        %552 = vmatprep.mubr.bf16.mxu0 0
        %553 = vmatmul.mubr.bf16.gmra.mrb[0].mxu0 %v518
        %v554 = vpop.f32.mrb[0].mxu0
        %v555 = vadd.f32 0.0, %v554
        %v556 = vpop.f32.mrb[0].mxu0
        %v557 = vpop.f32.mrb[0].mxu0
        %v558 = vpop.f32.mrb[0].mxu0
        %559 = vdwg.mxu0
        %v560 = vmul.f32 %v555, %v477
        %v561 = vmul.f32 %v555, %v478
        %v562 = vmul.f32 %v555, %v479
        %v563 = vmul.f32 %v555, %v480
        %v564 = vpack.c.bf16 %v561, %v560
        %v565 = vpack.c.bf16 %v563, %v562
        %v566 = vpack.c.bf16 %v555, %v555
        %568 = vrot.lane.b32.xlu0 %v566, 96
        %v569 = vpop.permute.xlu0 %568
        %v571 = vsel %vm485, %v564, 0
        %v574 = vsel %vm485, %v565, 0
        %v577 = vsel %vm485, %v569, 0
        %579 = vmatprep.subr.bf16.mxu0 0
        %580 = vmatpush1.bf16.xpose.msra.mxu0 %v577
        %581 = vmatprep.subr.bf16.mxu0 0
        %582 = vmatpush1.bf16.xpose.msra.mxu0 0
        %583 = vmatprep.subr.bf16.mxu0 0
        %584 = vmatpush1.bf16.xpose.msra.mxu0 0
        %585 = vmatprep.subr.bf16.mxu0 0
        %586 = vmatpush1.bf16.xpose.msra.mxu0 0
        %587 = vmatprep.subr.bf16.mxu0 0
        %588 = vmatpush1.bf16.xpose.msra.mxu0 0
        %589 = vmatprep.subr.bf16.mxu0 0
        %590 = vmatpush1.bf16.xpose.msra.mxu0 0
        %591 = vmatprep.subr.bf16.mxu0 0
        %592 = vmatpush1.bf16.xpose.msra.mxu0 0
        %593 = vmatprep.subr.bf16.mxu0 0
        %594 = vmatpush1.bf16.xpose.msra.mxu0 0
        %595 = vmatprep.subr.bf16.mxu0 0
        %596 = vmatpush1.bf16.xpose.msra.mxu0 0
        %597 = vmatprep.subr.bf16.mxu0 0
        %598 = vmatpush1.bf16.xpose.msra.mxu0 0
        %599 = vmatprep.subr.bf16.mxu0 0
        %600 = vmatpush1.bf16.xpose.msra.mxu0 0
        %601 = vmatprep.subr.bf16.mxu0 0
        %602 = vmatpush1.bf16.xpose.msra.mxu0 0
        %603 = vmatprep.subr.bf16.mxu0 0
        %604 = vmatpush1.bf16.xpose.msra.mxu0 0
        %605 = vmatprep.subr.bf16.mxu0 0
        %606 = vmatpush1.bf16.xpose.msra.mxu0 0
        %607 = vmatprep.subr.bf16.mxu0 0
        %608 = vmatpush1.bf16.xpose.msra.mxu0 0
        %609 = vmatprep.subr.bf16.mxu0 0
        %610 = vmatpush1.bf16.xpose.msra.mxu0 0
        %611 = vmatprep.mubr.bf16.mxu0 0
        %612 = vmatmul.mubr.bf16.gmra.mrb[0].mxu0 %v571
        %v613 = vpop.f32.mrb[0].mxu0
        %v614 = vadd.f32 %v481, %v613
        %v615 = vpop.f32.mrb[0].mxu0
        %v616 = vpop.f32.mrb[0].mxu0
        %v617 = vadd.f32 %v482, %v616
        %v618 = vpop.f32.mrb[0].mxu0
        %619 = vmatprep.mubr.bf16.mxu0 0
        %620 = vmatmul.mubr.bf16.gmra.mrb[0].mxu0 %v574
        %v621 = vpop.f32.mrb[0].mxu0
        %v622 = vadd.f32 %v483, %v621
        %v623 = vpop.f32.mrb[0].mxu0
        %v624 = vpop.f32.mrb[0].mxu0
        %v625 = vadd.f32 %v484, %v624
        %v626 = vpop.f32.mrb[0].mxu0
        %627 = vdwg.mxu0
        %vm628 = vcmask 64512
        %v629 = vsel %vm628, %v614, -inf
        %630 = vmax.xlane.f32.xlu0 %v629
        %v631 = vpop.xlane.xlu0 %630
        %v632 = vsel %vm628, %v617, -inf
        %633 = vmax.xlane.f32.xlu0 %v632
        %v634 = vpop.xlane.xlu0 %633
        %v635 = vsel %vm628, %v622, -inf
        %636 = vmax.xlane.f32.xlu0 %v635
        %v637 = vpop.xlane.xlu0 %636
        %v638 = vsel %vm628, %v625, -inf
        %639 = vmax.xlane.f32.xlu0 %v638
        %v640 = vpop.xlane.xlu0 %639
        %v641 = vsub.f32 %v614, %v631
        %v642 = vsub.f32 %v617, %v634
        %v643 = vsub.f32 %v622, %v637
        %v644 = vsub.f32 %v625, %v640
        %v645 = vmul.f32 %v641, 1.442695
        %v646 = vpow.pop %v645
        %v647 = vmul.f32 %v642, 1.442695
        %v648 = vpow.pop %v647
        %v649 = vmul.f32 %v643, 1.442695
        %v650 = vpow.pop %v649
        %v651 = vmul.f32 %v644, 1.442695
        %v652 = vpow.pop %v651
        %v653 = vsel %vm628, %v646, 0.0
        %654 = vadd.xlane.f32.xlu0 %v653
        %v655 = vpop.xlane.xlu0 %654
        %v656 = vsel %vm628, %v648, 0.0
        %657 = vadd.xlane.f32.xlu0 %v656
        %v658 = vpop.xlane.xlu0 %657
        %v659 = vsel %vm628, %v650, 0.0
        %660 = vadd.xlane.f32.xlu0 %v659
        %v661 = vpop.xlane.xlu0 %660
        %v662 = vsel %vm628, %v652, 0.0
        %663 = vadd.xlane.f32.xlu0 %v662
        %v664 = vpop.xlane.xlu0 %663
        %v665 = vrcp.pop %v655
        %v666 = vrcp.pop %v658
        %v667 = vrcp.pop %v661
        %v668 = vrcp.pop %v664
        %v669 = vmul.f32 %v646, %v665
        %v670 = vmul.f32 %v648, %v666
        %v671 = vmul.f32 %v650, %v667
        %v672 = vmul.f32 %v652, %v668
        %v673 = vpack.c.bf16 %v670, %v669
        %v674 = vpack.c.bf16 %v672, %v671
        %675 = vrot.lane.b32.xlu0 %v566, 64
        %v676 = vpop.permute.xlu0 %675
        %v678 = vsel %vm628, %v673, 0
        %v681 = vsel %vm628, %v674, 0
        %vm683 = vcmask 1043456
        %v685 = vsel %vm683, %v676, 0
        %687 = vmatprep.subr.bf16.mxu0 0
        %688 = vmatpush1.bf16.msra.mxu0 %v685
        %689 = vmatprep.subr.bf16.mxu0 0
        %690 = vmatpush1.bf16.msra.mxu0 0
        %691 = vmatprep.subr.bf16.mxu0 0
        %692 = vmatpush1.bf16.msra.mxu0 0
        %693 = vmatprep.subr.bf16.mxu0 0
        %694 = vmatpush1.bf16.msra.mxu0 0
        %695 = vmatprep.subr.bf16.mxu0 0
        %696 = vmatpush1.bf16.msra.mxu0 0
        %697 = vmatprep.subr.bf16.mxu0 0
        %698 = vmatpush1.bf16.msra.mxu0 0
        %699 = vmatprep.subr.bf16.mxu0 0
        %700 = vmatpush1.bf16.msra.mxu0 0
        %701 = vmatprep.subr.bf16.mxu0 0
        %702 = vmatpush1.bf16.msra.mxu0 0
        %703 = vmatprep.subr.bf16.mxu0 0
        %704 = vmatpush1.bf16.msra.mxu0 0
        %705 = vmatprep.subr.bf16.mxu0 0
        %706 = vmatpush1.bf16.msra.mxu0 0
        %707 = vmatprep.subr.bf16.mxu0 0
        %708 = vmatpush1.bf16.msra.mxu0 0
        %709 = vmatprep.subr.bf16.mxu0 0
        %710 = vmatpush1.bf16.msra.mxu0 0
        %711 = vmatprep.subr.bf16.mxu0 0
        %712 = vmatpush1.bf16.msra.mxu0 0
        %713 = vmatprep.subr.bf16.mxu0 0
        %714 = vmatpush1.bf16.msra.mxu0 0
        %715 = vmatprep.subr.bf16.mxu0 0
        %716 = vmatpush1.bf16.msra.mxu0 0
        %717 = vmatprep.subr.bf16.mxu0 0
        %718 = vmatpush1.bf16.msra.mxu0 0
        %719 = vmatprep.mubr.bf16.mxu0 0
        %720 = vmatmul.mubr.bf16.gmra.mrb[0].mxu0 %v678
        %v721 = vpop.f32.mrb[0].mxu0
        %v722 = vadd.f32 0.0, %v721
        %v723 = vpop.f32.mrb[0].mxu0
        %v724 = vpop.f32.mrb[0].mxu0
        %v725 = vadd.f32 0.0, %v724
        %v726 = vpop.f32.mrb[0].mxu0
        %727 = vmatprep.mubr.bf16.mxu0 0
        %728 = vmatmul.mubr.bf16.gmra.mrb[0].mxu0 %v681
        %v729 = vpop.f32.mrb[0].mxu0
        %v730 = vadd.f32 0.0, %v729
        %v731 = vpop.f32.mrb[0].mxu0
        %v732 = vpop.f32.mrb[0].mxu0
        %v733 = vadd.f32 0.0, %v732
        %v734 = vpop.f32.mrb[0].mxu0
        %735 = vdwg.mxu0
        %v736 = vmul.f32 %v722, %v477
        %v737 = vmul.f32 %v725, %v478
        %v738 = vmul.f32 %v730, %v479
        %v739 = vmul.f32 %v733, %v480
        %v740 = vadd.f32 %v736, %v737
        %v741 = vadd.f32 %v740, %v738
        %v742 = vadd.f32 %v741, %v739
        %v743 = vpack.c.bf16 %v742, %v742
        %v744 = vld [vmem:[%s6] sm:$0xf]
        %v745 = vld [vmem:[%s6 + $0x4] sm:$0xf]
        %v746 = vld [vmem:[%s6 + $0x8] sm:$0xf]
        %v747 = vld [vmem:[%s6 + $0xc] sm:$0xf]
        %v752 = vunpack.c.l.b16 %v744
        %v753 = vunpack.c.l.b16 %v745
        %v754 = vunpack.c.l.b16 %v746
        %v755 = vunpack.c.l.b16 %v747
        %v756 = vpack.c.b16 %v753, %v752
        %v757 = vpack.c.b16 %v755, %v754
        %v761 = vsel %vm485, %v743, 0
        %763 = vmatprep.subr.bf16.mxu0 0
        %764 = vmatpush1.bf16.msra.mxu0 %v756
        %765 = vmatprep.subr.bf16.mxu0 0
        %766 = vmatpush1.bf16.msra.mxu0 %v757
        %767 = vmatprep.subr.bf16.mxu0 0
        %768 = vmatpush1.bf16.msra.mxu0 0
        %769 = vmatprep.subr.bf16.mxu0 0
        %770 = vmatpush1.bf16.msra.mxu0 0
        %771 = vmatprep.subr.bf16.mxu0 0
        %772 = vmatpush1.bf16.msra.mxu0 0
        %773 = vmatprep.subr.bf16.mxu0 0
        %774 = vmatpush1.bf16.msra.mxu0 0
        %775 = vmatprep.subr.bf16.mxu0 0
        %776 = vmatpush1.bf16.msra.mxu0 0
        %777 = vmatprep.subr.bf16.mxu0 0
        %778 = vmatpush1.bf16.msra.mxu0 0
        %779 = vmatprep.subr.bf16.mxu0 0
        %780 = vmatpush1.bf16.msra.mxu0 0
        %781 = vmatprep.subr.bf16.mxu0 0
        %782 = vmatpush1.bf16.msra.mxu0 0
        %783 = vmatprep.subr.bf16.mxu0 0
        %784 = vmatpush1.bf16.msra.mxu0 0
        %785 = vmatprep.subr.bf16.mxu0 0
        %786 = vmatpush1.bf16.msra.mxu0 0
        %787 = vmatprep.subr.bf16.mxu0 0
        %788 = vmatpush1.bf16.msra.mxu0 0
        %789 = vmatprep.subr.bf16.mxu0 0
        %790 = vmatpush1.bf16.msra.mxu0 0
        %791 = vmatprep.subr.bf16.mxu0 0
        %792 = vmatpush1.bf16.msra.mxu0 0
        %793 = vmatprep.subr.bf16.mxu0 0
        %794 = vmatpush1.bf16.msra.mxu0 0
        %795 = vmatprep.mubr.bf16.mxu0 0
        %796 = vmatmul.mubr.bf16.gmra.mrb[0].mxu0 %v761
        %v797 = vpop.f32.mrb[0].mxu0
        %v798 = vadd.f32 0.0, %v797
        %v799 = vpop.f32.mrb[0].mxu0
        %v800 = vpop.f32.mrb[0].mxu0
        %v801 = vpop.f32.mrb[0].mxu0
        %802 = vdwg.mxu0
        %v803 = vadd.f32 %v472, %v798
        %v804 = vsel %vm485, %v803, 0.0
        %805 = vadd.xlane.f32.xlu0 %v804
        %v806 = vpop.xlane.xlu0 %805
        %v807 = vmul.f32 %v806, %v489
        %v808 = vsub.f32 %v803, %v807
        %v809 = vmul.f32 %v808, %v808
        %v810 = vsel %vm485, %v809, 0.0
        %811 = vadd.xlane.f32.xlu0 %v810
        %v812 = vpop.xlane.xlu0 %811
        %v813 = vmul.f32 %v812, %v489
        %v814 = vadd.f32 %v813, 1e-05
        %v815 = vrsqrt.pop %v814
        %v816 = vmul.f32 %v808, %v815
        %v817 = vpack.c.bf16 %v816, %v816
        %v818 = vld [vmem:[%s7] sm:$0xf]
        %v819 = vld [vmem:[%s7 + $0x4] sm:$0xf]
        %v820 = vld [vmem:[%s7 + $0x8] sm:$0xf]
        %v821 = vld [vmem:[%s7 + $0xc] sm:$0xf]
        %v826 = vunpack.c.l.b16 %v818
        %v827 = vunpack.c.l.b16 %v819
        %v828 = vunpack.c.l.b16 %v820
        %v829 = vunpack.c.l.b16 %v821
        %v830 = vpack.c.b16 %v827, %v826
        %v831 = vpack.c.b16 %v829, %v828
        %v835 = vsel %vm485, %v817, 0
        %837 = vmatprep.subr.bf16.mxu0 0
        %838 = vmatpush1.bf16.msra.mxu0 %v830
        %839 = vmatprep.subr.bf16.mxu0 0
        %840 = vmatpush1.bf16.msra.mxu0 %v831
        %841 = vmatprep.subr.bf16.mxu0 0
        %842 = vmatpush1.bf16.msra.mxu0 0
        %843 = vmatprep.subr.bf16.mxu0 0
        %844 = vmatpush1.bf16.msra.mxu0 0
        %845 = vmatprep.subr.bf16.mxu0 0
        %846 = vmatpush1.bf16.msra.mxu0 0
        %847 = vmatprep.subr.bf16.mxu0 0
        %848 = vmatpush1.bf16.msra.mxu0 0
        %849 = vmatprep.subr.bf16.mxu0 0
        %850 = vmatpush1.bf16.msra.mxu0 0
        %851 = vmatprep.subr.bf16.mxu0 0
        %852 = vmatpush1.bf16.msra.mxu0 0
        %853 = vmatprep.subr.bf16.mxu0 0
        %854 = vmatpush1.bf16.msra.mxu0 0
        %855 = vmatprep.subr.bf16.mxu0 0
        %856 = vmatpush1.bf16.msra.mxu0 0
        %857 = vmatprep.subr.bf16.mxu0 0
        %858 = vmatpush1.bf16.msra.mxu0 0
        %859 = vmatprep.subr.bf16.mxu0 0
        %860 = vmatpush1.bf16.msra.mxu0 0
        %861 = vmatprep.subr.bf16.mxu0 0
        %862 = vmatpush1.bf16.msra.mxu0 0
        %863 = vmatprep.subr.bf16.mxu0 0
        %864 = vmatpush1.bf16.msra.mxu0 0
        %865 = vmatprep.subr.bf16.mxu0 0
        %866 = vmatpush1.bf16.msra.mxu0 0
        %867 = vmatprep.subr.bf16.mxu0 0
        %868 = vmatpush1.bf16.msra.mxu0 0
        %869 = vmatprep.mubr.bf16.mxu0 0
        %870 = vmatmul.mubr.bf16.gmra.mrb[0].mxu0 %v835
        %v871 = vpop.f32.mrb[0].mxu0
        %v872 = vadd.f32 0.0, %v871
        %v873 = vpop.f32.mrb[0].mxu0
        %v874 = vpop.f32.mrb[0].mxu0
        %v875 = vpop.f32.mrb[0].mxu0
        %876 = vdwg.mxu0
        %v877 = vmul.f32 %v872, 0.5
        %v878 = vmul.f32 %v872, 0.70710677
        %v879 = vand.u32 2147483647, %v878
        %v880 = vmul.f32 %v879, 0.3275911
        %v881 = vadd.f32 %v880, 1.0
        %v882 = vrcp.pop %v881
        %v883 = vmul.f32 1.0, %v882
        %v884 = vmul.f32 %v883, 1.0614054
        %v885 = vadd.f32 %v884, -1.4531521
        %v886 = vmul.f32 %v885, %v883
        %v887 = vadd.f32 %v886, 1.4214138
        %v888 = vmul.f32 %v887, %v883
        %v889 = vadd.f32 %v888, -0.28449672
        %v890 = vmul.f32 %v889, %v883
        %v891 = vadd.f32 %v890, 0.2548296
        %v892 = vmul.f32 %v891, %v883
        %v893 = vsub.f32 0.0, %v879
        %v894 = vmul.f32 %v893, %v879
        %v895 = vmul.f32 %v894, 1.442695
        %v896 = vpow.pop %v895
        %v897 = vmul.f32 %v892, %v896
        %v898 = vsub.f32 1.0, %v897
        %vm899 = vcmp.ge.f32.partialorder %v878, 0.0
        %v900 = vsub.f32 0.0, %v898
        %v901 = vsel %vm899, %v898, %v900
        %v902 = vadd.f32 %v901, 1.0
        %v903 = vmul.f32 %v877, %v902
        %v904 = vpack.c.bf16 %v903, %v903
        %v905 = vld [vmem:[%s8] sm:$0xf]
        %v906 = vld [vmem:[%s8 + $0x4] sm:$0xf]
        %v907 = vld [vmem:[%s8 + $0x8] sm:$0xf]
        %v908 = vld [vmem:[%s8 + $0xc] sm:$0xf]
        %v909 = vld [vmem:[%s8 + $0x10] sm:$0xf]
        %v910 = vld [vmem:[%s8 + $0x14] sm:$0xf]
        %v911 = vld [vmem:[%s8 + $0x18] sm:$0xf]
        %v912 = vld [vmem:[%s8 + $0x1c] sm:$0xf]
        %v913 = vld [vmem:[%s8 + $0x20] sm:$0xf]
        %v914 = vld [vmem:[%s8 + $0x24] sm:$0xf]
        %v915 = vld [vmem:[%s8 + $0x28] sm:$0xf]
        %v916 = vld [vmem:[%s8 + $0x2c] sm:$0xf]
        %v917 = vld [vmem:[%s8 + $0x30] sm:$0xf]
        %v918 = vld [vmem:[%s8 + $0x34] sm:$0xf]
        %v919 = vld [vmem:[%s8 + $0x38] sm:$0xf]
        %v920 = vld [vmem:[%s8 + $0x3c] sm:$0xf]
        %v937 = vunpack.c.l.b16 %v905
        %v938 = vunpack.c.l.b16 %v906
        %v939 = vunpack.c.l.b16 %v907
        %v940 = vunpack.c.l.b16 %v908
        %v941 = vunpack.c.l.b16 %v909
        %v942 = vunpack.c.l.b16 %v910
        %v943 = vunpack.c.l.b16 %v911
        %v944 = vunpack.c.l.b16 %v912
        %v945 = vunpack.c.l.b16 %v913
        %v946 = vunpack.c.l.b16 %v914
        %v947 = vunpack.c.l.b16 %v915
        %v948 = vunpack.c.l.b16 %v916
        %v949 = vunpack.c.l.b16 %v917
        %v950 = vunpack.c.l.b16 %v918
        %v951 = vunpack.c.l.b16 %v919
        %v952 = vunpack.c.l.b16 %v920
        %v953 = vpack.c.b16 %v938, %v937
        %v954 = vpack.c.b16 %v940, %v939
        %v955 = vpack.c.b16 %v942, %v941
        %v956 = vpack.c.b16 %v944, %v943
        %v957 = vpack.c.b16 %v946, %v945
        %v958 = vpack.c.b16 %v948, %v947
        %v959 = vpack.c.b16 %v950, %v949
        %v960 = vpack.c.b16 %v952, %v951
        %969 = vmatprep.subr.bf16.mxu0 0
        %970 = vmatpush1.bf16.msra.mxu0 %v953
        %971 = vmatprep.subr.bf16.mxu0 0
        %972 = vmatpush1.bf16.msra.mxu0 %v954
        %973 = vmatprep.subr.bf16.mxu0 0
        %974 = vmatpush1.bf16.msra.mxu0 %v955
        %975 = vmatprep.subr.bf16.mxu0 0
        %976 = vmatpush1.bf16.msra.mxu0 %v956
        %977 = vmatprep.subr.bf16.mxu0 0
        %978 = vmatpush1.bf16.msra.mxu0 %v957
        %979 = vmatprep.subr.bf16.mxu0 0
        %980 = vmatpush1.bf16.msra.mxu0 %v958
        %981 = vmatprep.subr.bf16.mxu0 0
        %982 = vmatpush1.bf16.msra.mxu0 %v959
        %983 = vmatprep.subr.bf16.mxu0 0
        %984 = vmatpush1.bf16.msra.mxu0 %v960
        %985 = vmatprep.subr.bf16.mxu0 0
        %986 = vmatpush1.bf16.msra.mxu0 0
        %987 = vmatprep.subr.bf16.mxu0 0
        %988 = vmatpush1.bf16.msra.mxu0 0
        %989 = vmatprep.subr.bf16.mxu0 0
        %990 = vmatpush1.bf16.msra.mxu0 0
        %991 = vmatprep.subr.bf16.mxu0 0
        %992 = vmatpush1.bf16.msra.mxu0 0
        %993 = vmatprep.subr.bf16.mxu0 0
        %994 = vmatpush1.bf16.msra.mxu0 0
        %995 = vmatprep.subr.bf16.mxu0 0
        %996 = vmatpush1.bf16.msra.mxu0 0
        %997 = vmatprep.subr.bf16.mxu0 0
        %998 = vmatpush1.bf16.msra.mxu0 0
        %999 = vmatprep.subr.bf16.mxu0 0
        %1000 = vmatpush1.bf16.msra.mxu0 0
        %1001 = vmatprep.mubr.bf16.mxu0 0
        %1002 = vmatmul.mubr.bf16.gmra.mrb[0].mxu0 %v904
        %v1003 = vpop.f32.mrb[0].mxu0
        %v1004 = vadd.f32 0.0, %v1003
        %v1005 = vpop.f32.mrb[0].mxu0
        %v1006 = vpop.f32.mrb[0].mxu0
        %v1007 = vpop.f32.mrb[0].mxu0
        %1008 = vdwg.mxu0
        %v1009 = vadd.f32 %v803, %v1004
        %v1010 = vsel %vm485, %v1009, 0.0
        %1011 = vadd.xlane.f32.xlu0 %v1010
        %v1012 = vpop.xlane.xlu0 %1011
        %v1013 = vmul.f32 %v1012, %v489
        %v1014 = vsub.f32 %v1009, %v1013
        %v1015 = vmul.f32 %v1014, %v1014
        %v1016 = vsel %vm485, %v1015, 0.0
        %1017 = vadd.xlane.f32.xlu0 %v1016
        %v1018 = vpop.xlane.xlu0 %1017
        %v1019 = vmul.f32 %v1018, %v489
        %v1020 = vadd.f32 %v1019, 1e-05
        %v1021 = vrsqrt.pop %v1020
        %v1022 = vmul.f32 %v1014, %v1021
        %v1023 = vpack.c.bf16 %v1022, %v1022
        %s1024 = scalar_lea.vmem %s5, 16
        %v1025 = vld [vmem:[%s1024] sm:$0xf]
        %v1026 = vld [vmem:[%s1024 + $0x4] sm:$0xf]
        %v1027 = vld [vmem:[%s1024 + $0x8] sm:$0xf]
        %v1028 = vld [vmem:[%s1024 + $0xc] sm:$0xf]
        %v1033 = vunpack.c.l.b16 %v1025
        %v1034 = vunpack.c.l.b16 %v1026
        %v1035 = vunpack.c.l.b16 %v1027
        %v1036 = vunpack.c.l.b16 %v1028
        %v1037 = vpack.c.b16 %v1034, %v1033
        %v1038 = vpack.c.b16 %v1036, %v1035
        %v1042 = vsel %vm485, %v1023, 0
        %1044 = vmatprep.subr.bf16.mxu0 0
        %1045 = vmatpush1.bf16.msra.mxu0 %v1037
        %1046 = vmatprep.subr.bf16.mxu0 0
        %1047 = vmatpush1.bf16.msra.mxu0 %v1038
        %1048 = vmatprep.subr.bf16.mxu0 0
        %1049 = vmatpush1.bf16.msra.mxu0 0
        %1050 = vmatprep.subr.bf16.mxu0 0
        %1051 = vmatpush1.bf16.msra.mxu0 0
        %1052 = vmatprep.subr.bf16.mxu0 0
        %1053 = vmatpush1.bf16.msra.mxu0 0
        %1054 = vmatprep.subr.bf16.mxu0 0
        %1055 = vmatpush1.bf16.msra.mxu0 0
        %1056 = vmatprep.subr.bf16.mxu0 0
        %1057 = vmatpush1.bf16.msra.mxu0 0
        %1058 = vmatprep.subr.bf16.mxu0 0
        %1059 = vmatpush1.bf16.msra.mxu0 0
        %1060 = vmatprep.subr.bf16.mxu0 0
        %1061 = vmatpush1.bf16.msra.mxu0 0
        %1062 = vmatprep.subr.bf16.mxu0 0
        %1063 = vmatpush1.bf16.msra.mxu0 0
        %1064 = vmatprep.subr.bf16.mxu0 0
        %1065 = vmatpush1.bf16.msra.mxu0 0
        %1066 = vmatprep.subr.bf16.mxu0 0
        %1067 = vmatpush1.bf16.msra.mxu0 0
        %1068 = vmatprep.subr.bf16.mxu0 0
        %1069 = vmatpush1.bf16.msra.mxu0 0
        %1070 = vmatprep.subr.bf16.mxu0 0
        %1071 = vmatpush1.bf16.msra.mxu0 0
        %1072 = vmatprep.subr.bf16.mxu0 0
        %1073 = vmatpush1.bf16.msra.mxu0 0
        %1074 = vmatprep.subr.bf16.mxu0 0
        %1075 = vmatpush1.bf16.msra.mxu0 0
        %1076 = vmatprep.mubr.bf16.mxu0 0
        %1077 = vmatmul.mubr.bf16.gmra.mrb[0].mxu0 %v1042
        %v1078 = vpop.f32.mrb[0].mxu0
        %v1079 = vadd.f32 0.0, %v1078
        %v1080 = vpop.f32.mrb[0].mxu0
        %v1081 = vpop.f32.mrb[0].mxu0
        %v1082 = vpop.f32.mrb[0].mxu0
        %1083 = vdwg.mxu0
        %v1084 = vmul.f32 %v1079, %v477
        %v1085 = vmul.f32 %v1079, %v478
        %v1086 = vmul.f32 %v1079, %v479
        %v1087 = vmul.f32 %v1079, %v480
        %v1088 = vpack.c.bf16 %v1085, %v1084
        %v1089 = vpack.c.bf16 %v1087, %v1086
        %v1090 = vpack.c.bf16 %v1079, %v1079
        %1092 = vrot.lane.b32.xlu0 %v1090, 96
        %v1093 = vpop.permute.xlu0 %1092
        %v1095 = vsel %vm485, %v1088, 0
        %v1098 = vsel %vm485, %v1089, 0
        %v1101 = vsel %vm485, %v1093, 0
        %1103 = vmatprep.subr.bf16.mxu0 0
        %1104 = vmatpush1.bf16.xpose.msra.mxu0 %v1101
        %1105 = vmatprep.subr.bf16.mxu0 0
        %1106 = vmatpush1.bf16.xpose.msra.mxu0 0
        %1107 = vmatprep.subr.bf16.mxu0 0
        %1108 = vmatpush1.bf16.xpose.msra.mxu0 0
        %1109 = vmatprep.subr.bf16.mxu0 0
        %1110 = vmatpush1.bf16.xpose.msra.mxu0 0
        %1111 = vmatprep.subr.bf16.mxu0 0
        %1112 = vmatpush1.bf16.xpose.msra.mxu0 0
        %1113 = vmatprep.subr.bf16.mxu0 0
        %1114 = vmatpush1.bf16.xpose.msra.mxu0 0
        %1115 = vmatprep.subr.bf16.mxu0 0
        %1116 = vmatpush1.bf16.xpose.msra.mxu0 0
        %1117 = vmatprep.subr.bf16.mxu0 0
        %1118 = vmatpush1.bf16.xpose.msra.mxu0 0
        %1119 = vmatprep.subr.bf16.mxu0 0
        %1120 = vmatpush1.bf16.xpose.msra.mxu0 0
        %1121 = vmatprep.subr.bf16.mxu0 0
        %1122 = vmatpush1.bf16.xpose.msra.mxu0 0
        %1123 = vmatprep.subr.bf16.mxu0 0
        %1124 = vmatpush1.bf16.xpose.msra.mxu0 0
        %1125 = vmatprep.subr.bf16.mxu0 0
        %1126 = vmatpush1.bf16.xpose.msra.mxu0 0
        %1127 = vmatprep.subr.bf16.mxu0 0
        %1128 = vmatpush1.bf16.xpose.msra.mxu0 0
        %1129 = vmatprep.subr.bf16.mxu0 0
        %1130 = vmatpush1.bf16.xpose.msra.mxu0 0
        %1131 = vmatprep.subr.bf16.mxu0 0
        %1132 = vmatpush1.bf16.xpose.msra.mxu0 0
        %1133 = vmatprep.subr.bf16.mxu0 0
        %1134 = vmatpush1.bf16.xpose.msra.mxu0 0
        %1135 = vmatprep.mubr.bf16.mxu0 0
        %1136 = vmatmul.mubr.bf16.gmra.mrb[0].mxu0 %v1095
        %v1137 = vpop.f32.mrb[0].mxu0
        %v1138 = vadd.f32 %v481, %v1137
        %v1139 = vpop.f32.mrb[0].mxu0
        %v1140 = vpop.f32.mrb[0].mxu0
        %v1141 = vadd.f32 %v482, %v1140
        %v1142 = vpop.f32.mrb[0].mxu0
        %1143 = vmatprep.mubr.bf16.mxu0 0
        %1144 = vmatmul.mubr.bf16.gmra.mrb[0].mxu0 %v1098
        %v1145 = vpop.f32.mrb[0].mxu0
        %v1146 = vadd.f32 %v483, %v1145
        %v1147 = vpop.f32.mrb[0].mxu0
        %v1148 = vpop.f32.mrb[0].mxu0
        %v1149 = vadd.f32 %v484, %v1148
        %v1150 = vpop.f32.mrb[0].mxu0
        %1151 = vdwg.mxu0
        %v1152 = vsel %vm628, %v1138, -inf
        %1153 = vmax.xlane.f32.xlu0 %v1152
        %v1154 = vpop.xlane.xlu0 %1153
        %v1155 = vsel %vm628, %v1141, -inf
        %1156 = vmax.xlane.f32.xlu0 %v1155
        %v1157 = vpop.xlane.xlu0 %1156
        %v1158 = vsel %vm628, %v1146, -inf
        %1159 = vmax.xlane.f32.xlu0 %v1158
        %v1160 = vpop.xlane.xlu0 %1159
        %v1161 = vsel %vm628, %v1149, -inf
        %1162 = vmax.xlane.f32.xlu0 %v1161
        %v1163 = vpop.xlane.xlu0 %1162
        %v1164 = vsub.f32 %v1138, %v1154
        %v1165 = vsub.f32 %v1141, %v1157
        %v1166 = vsub.f32 %v1146, %v1160
        %v1167 = vsub.f32 %v1149, %v1163
        %v1168 = vmul.f32 %v1164, 1.442695
        %v1169 = vpow.pop %v1168
        %v1170 = vmul.f32 %v1165, 1.442695
        %v1171 = vpow.pop %v1170
        %v1172 = vmul.f32 %v1166, 1.442695
        %v1173 = vpow.pop %v1172
        %v1174 = vmul.f32 %v1167, 1.442695
        %v1175 = vpow.pop %v1174
        %v1176 = vsel %vm628, %v1169, 0.0
        %1177 = vadd.xlane.f32.xlu0 %v1176
        %v1178 = vpop.xlane.xlu0 %1177
        %v1179 = vsel %vm628, %v1171, 0.0
        %1180 = vadd.xlane.f32.xlu0 %v1179
        %v1181 = vpop.xlane.xlu0 %1180
        %v1182 = vsel %vm628, %v1173, 0.0
        %1183 = vadd.xlane.f32.xlu0 %v1182
        %v1184 = vpop.xlane.xlu0 %1183
        %v1185 = vsel %vm628, %v1175, 0.0
        %1186 = vadd.xlane.f32.xlu0 %v1185
        %v1187 = vpop.xlane.xlu0 %1186
        %v1188 = vrcp.pop %v1178
        %v1189 = vrcp.pop %v1181
        %v1190 = vrcp.pop %v1184
        %v1191 = vrcp.pop %v1187
        %v1192 = vmul.f32 %v1169, %v1188
        %v1193 = vmul.f32 %v1171, %v1189
        %v1194 = vmul.f32 %v1173, %v1190
        %v1195 = vmul.f32 %v1175, %v1191
        %v1196 = vpack.c.bf16 %v1193, %v1192
        %v1197 = vpack.c.bf16 %v1195, %v1194
        %1198 = vrot.lane.b32.xlu0 %v1090, 64
        %v1199 = vpop.permute.xlu0 %1198
        %v1201 = vsel %vm628, %v1196, 0
        %v1204 = vsel %vm628, %v1197, 0
        %v1207 = vsel %vm683, %v1199, 0
        %1209 = vmatprep.subr.bf16.mxu0 0
        %1210 = vmatpush1.bf16.msra.mxu0 %v1207
        %1211 = vmatprep.subr.bf16.mxu0 0
        %1212 = vmatpush1.bf16.msra.mxu0 0
        %1213 = vmatprep.subr.bf16.mxu0 0
        %1214 = vmatpush1.bf16.msra.mxu0 0
        %1215 = vmatprep.subr.bf16.mxu0 0
        %1216 = vmatpush1.bf16.msra.mxu0 0
        %1217 = vmatprep.subr.bf16.mxu0 0
        %1218 = vmatpush1.bf16.msra.mxu0 0
        %1219 = vmatprep.subr.bf16.mxu0 0
        %1220 = vmatpush1.bf16.msra.mxu0 0
        %1221 = vmatprep.subr.bf16.mxu0 0
        %1222 = vmatpush1.bf16.msra.mxu0 0
        %1223 = vmatprep.subr.bf16.mxu0 0
        %1224 = vmatpush1.bf16.msra.mxu0 0
        %1225 = vmatprep.subr.bf16.mxu0 0
        %1226 = vmatpush1.bf16.msra.mxu0 0
        %1227 = vmatprep.subr.bf16.mxu0 0
        %1228 = vmatpush1.bf16.msra.mxu0 0
        %1229 = vmatprep.subr.bf16.mxu0 0
        %1230 = vmatpush1.bf16.msra.mxu0 0
        %1231 = vmatprep.subr.bf16.mxu0 0
        %1232 = vmatpush1.bf16.msra.mxu0 0
        %1233 = vmatprep.subr.bf16.mxu0 0
        %1234 = vmatpush1.bf16.msra.mxu0 0
        %1235 = vmatprep.subr.bf16.mxu0 0
        %1236 = vmatpush1.bf16.msra.mxu0 0
        %1237 = vmatprep.subr.bf16.mxu0 0
        %1238 = vmatpush1.bf16.msra.mxu0 0
        %1239 = vmatprep.subr.bf16.mxu0 0
        %1240 = vmatpush1.bf16.msra.mxu0 0
        %1241 = vmatprep.mubr.bf16.mxu0 0
        %1242 = vmatmul.mubr.bf16.gmra.mrb[0].mxu0 %v1201
        %v1243 = vpop.f32.mrb[0].mxu0
        %v1244 = vadd.f32 0.0, %v1243
        %v1245 = vpop.f32.mrb[0].mxu0
        %v1246 = vpop.f32.mrb[0].mxu0
        %v1247 = vadd.f32 0.0, %v1246
        %v1248 = vpop.f32.mrb[0].mxu0
        %1249 = vmatprep.mubr.bf16.mxu0 0
        %1250 = vmatmul.mubr.bf16.gmra.mrb[0].mxu0 %v1204
        %v1251 = vpop.f32.mrb[0].mxu0
        %v1252 = vadd.f32 0.0, %v1251
        %v1253 = vpop.f32.mrb[0].mxu0
        %v1254 = vpop.f32.mrb[0].mxu0
        %v1255 = vadd.f32 0.0, %v1254
        %v1256 = vpop.f32.mrb[0].mxu0
        %1257 = vdwg.mxu0
        %v1258 = vmul.f32 %v1244, %v477
        %v1259 = vmul.f32 %v1247, %v478
        %v1260 = vmul.f32 %v1252, %v479
        %v1261 = vmul.f32 %v1255, %v480
        %v1262 = vadd.f32 %v1258, %v1259
        %v1263 = vadd.f32 %v1262, %v1260
        %v1264 = vadd.f32 %v1263, %v1261
        %v1265 = vpack.c.bf16 %v1264, %v1264
        %s1266 = scalar_lea.vmem %s6, 16
        %v1267 = vld [vmem:[%s1266] sm:$0xf]
        %v1268 = vld [vmem:[%s1266 + $0x4] sm:$0xf]
        %v1269 = vld [vmem:[%s1266 + $0x8] sm:$0xf]
        %v1270 = vld [vmem:[%s1266 + $0xc] sm:$0xf]
        %v1275 = vunpack.c.l.b16 %v1267
        %v1276 = vunpack.c.l.b16 %v1268
        %v1277 = vunpack.c.l.b16 %v1269
        %v1278 = vunpack.c.l.b16 %v1270
        %v1279 = vpack.c.b16 %v1276, %v1275
        %v1280 = vpack.c.b16 %v1278, %v1277
        %v1284 = vsel %vm485, %v1265, 0
        %1286 = vmatprep.subr.bf16.mxu0 0
        %1287 = vmatpush1.bf16.msra.mxu0 %v1279
        %1288 = vmatprep.subr.bf16.mxu0 0
        %1289 = vmatpush1.bf16.msra.mxu0 %v1280
        %1290 = vmatprep.subr.bf16.mxu0 0
        %1291 = vmatpush1.bf16.msra.mxu0 0
        %1292 = vmatprep.subr.bf16.mxu0 0
        %1293 = vmatpush1.bf16.msra.mxu0 0
        %1294 = vmatprep.subr.bf16.mxu0 0
        %1295 = vmatpush1.bf16.msra.mxu0 0
        %1296 = vmatprep.subr.bf16.mxu0 0
        %1297 = vmatpush1.bf16.msra.mxu0 0
        %1298 = vmatprep.subr.bf16.mxu0 0
        %1299 = vmatpush1.bf16.msra.mxu0 0
        %1300 = vmatprep.subr.bf16.mxu0 0
        %1301 = vmatpush1.bf16.msra.mxu0 0
        %1302 = vmatprep.subr.bf16.mxu0 0
        %1303 = vmatpush1.bf16.msra.mxu0 0
        %1304 = vmatprep.subr.bf16.mxu0 0
        %1305 = vmatpush1.bf16.msra.mxu0 0
        %1306 = vmatprep.subr.bf16.mxu0 0
        %1307 = vmatpush1.bf16.msra.mxu0 0
        %1308 = vmatprep.subr.bf16.mxu0 0
        %1309 = vmatpush1.bf16.msra.mxu0 0
        %1310 = vmatprep.subr.bf16.mxu0 0
        %1311 = vmatpush1.bf16.msra.mxu0 0
        %1312 = vmatprep.subr.bf16.mxu0 0
        %1313 = vmatpush1.bf16.msra.mxu0 0
        %1314 = vmatprep.subr.bf16.mxu0 0
        %1315 = vmatpush1.bf16.msra.mxu0 0
        %1316 = vmatprep.subr.bf16.mxu0 0
        %1317 = vmatpush1.bf16.msra.mxu0 0
        %1318 = vmatprep.mubr.bf16.mxu0 0
        %1319 = vmatmul.mubr.bf16.gmra.mrb[0].mxu0 %v1284
        %v1320 = vpop.f32.mrb[0].mxu0
        %v1321 = vadd.f32 0.0, %v1320
        %v1322 = vpop.f32.mrb[0].mxu0
        %v1323 = vpop.f32.mrb[0].mxu0
        %v1324 = vpop.f32.mrb[0].mxu0
        %1325 = vdwg.mxu0
        %v1326 = vadd.f32 %v1009, %v1321
        %v1327 = vsel %vm485, %v1326, 0.0
        %1328 = vadd.xlane.f32.xlu0 %v1327
        %v1329 = vpop.xlane.xlu0 %1328
        %v1330 = vmul.f32 %v1329, %v489
        %v1331 = vsub.f32 %v1326, %v1330
        %v1332 = vmul.f32 %v1331, %v1331
        %v1333 = vsel %vm485, %v1332, 0.0
        %1334 = vadd.xlane.f32.xlu0 %v1333
        %v1335 = vpop.xlane.xlu0 %1334
        %v1336 = vmul.f32 %v1335, %v489
        %v1337 = vadd.f32 %v1336, 1e-05
        %v1338 = vrsqrt.pop %v1337
        %v1339 = vmul.f32 %v1331, %v1338
        %v1340 = vpack.c.bf16 %v1339, %v1339
        %s1341 = scalar_lea.vmem %s7, 16
        %v1342 = vld [vmem:[%s1341] sm:$0xf]
        %v1343 = vld [vmem:[%s1341 + $0x4] sm:$0xf]
        %v1344 = vld [vmem:[%s1341 + $0x8] sm:$0xf]
        %v1345 = vld [vmem:[%s1341 + $0xc] sm:$0xf]
        %v1350 = vunpack.c.l.b16 %v1342
        %v1351 = vunpack.c.l.b16 %v1343
        %v1352 = vunpack.c.l.b16 %v1344
        %v1353 = vunpack.c.l.b16 %v1345
        %v1354 = vpack.c.b16 %v1351, %v1350
        %v1355 = vpack.c.b16 %v1353, %v1352
        %v1359 = vsel %vm485, %v1340, 0
        %1361 = vmatprep.subr.bf16.mxu0 0
        %1362 = vmatpush1.bf16.msra.mxu0 %v1354
        %1363 = vmatprep.subr.bf16.mxu0 0
        %1364 = vmatpush1.bf16.msra.mxu0 %v1355
        %1365 = vmatprep.subr.bf16.mxu0 0
        %1366 = vmatpush1.bf16.msra.mxu0 0
        %1367 = vmatprep.subr.bf16.mxu0 0
        %1368 = vmatpush1.bf16.msra.mxu0 0
        %1369 = vmatprep.subr.bf16.mxu0 0
        %1370 = vmatpush1.bf16.msra.mxu0 0
        %1371 = vmatprep.subr.bf16.mxu0 0
        %1372 = vmatpush1.bf16.msra.mxu0 0
        %1373 = vmatprep.subr.bf16.mxu0 0
        %1374 = vmatpush1.bf16.msra.mxu0 0
        %1375 = vmatprep.subr.bf16.mxu0 0
        %1376 = vmatpush1.bf16.msra.mxu0 0
        %1377 = vmatprep.subr.bf16.mxu0 0
        %1378 = vmatpush1.bf16.msra.mxu0 0
        %1379 = vmatprep.subr.bf16.mxu0 0
        %1380 = vmatpush1.bf16.msra.mxu0 0
        %1381 = vmatprep.subr.bf16.mxu0 0
        %1382 = vmatpush1.bf16.msra.mxu0 0
        %1383 = vmatprep.subr.bf16.mxu0 0
        %1384 = vmatpush1.bf16.msra.mxu0 0
        %1385 = vmatprep.subr.bf16.mxu0 0
        %1386 = vmatpush1.bf16.msra.mxu0 0
        %1387 = vmatprep.subr.bf16.mxu0 0
        %1388 = vmatpush1.bf16.msra.mxu0 0
        %1389 = vmatprep.subr.bf16.mxu0 0
        %1390 = vmatpush1.bf16.msra.mxu0 0
        %1391 = vmatprep.subr.bf16.mxu0 0
        %1392 = vmatpush1.bf16.msra.mxu0 0
        %1393 = vmatprep.mubr.bf16.mxu0 0
        %1394 = vmatmul.mubr.bf16.gmra.mrb[0].mxu0 %v1359
        %v1395 = vpop.f32.mrb[0].mxu0
        %v1396 = vadd.f32 0.0, %v1395
        %v1397 = vpop.f32.mrb[0].mxu0
        %v1398 = vpop.f32.mrb[0].mxu0
        %v1399 = vpop.f32.mrb[0].mxu0
        %1400 = vdwg.mxu0
        %v1401 = vmul.f32 %v1396, 0.5
        %v1402 = vmul.f32 %v1396, 0.70710677
        %v1403 = vand.u32 2147483647, %v1402
        %v1404 = vmul.f32 %v1403, 0.3275911
        %v1405 = vadd.f32 %v1404, 1.0
        %v1406 = vrcp.pop %v1405
        %v1407 = vmul.f32 1.0, %v1406
        %v1408 = vmul.f32 %v1407, 1.0614054
        %v1409 = vadd.f32 %v1408, -1.4531521
        %v1410 = vmul.f32 %v1409, %v1407
        %v1411 = vadd.f32 %v1410, 1.4214138
        %v1412 = vmul.f32 %v1411, %v1407
        %v1413 = vadd.f32 %v1412, -0.28449672
        %v1414 = vmul.f32 %v1413, %v1407
        %v1415 = vadd.f32 %v1414, 0.2548296
        %v1416 = vmul.f32 %v1415, %v1407
        %v1417 = vsub.f32 0.0, %v1403
        %v1418 = vmul.f32 %v1417, %v1403
        %v1419 = vmul.f32 %v1418, 1.442695
        %v1420 = vpow.pop %v1419
        %v1421 = vmul.f32 %v1416, %v1420
        %v1422 = vsub.f32 1.0, %v1421
        %vm1423 = vcmp.ge.f32.partialorder %v1402, 0.0
        %v1424 = vsub.f32 0.0, %v1422
        %v1425 = vsel %vm1423, %v1422, %v1424
        %v1426 = vadd.f32 %v1425, 1.0
        %v1427 = vmul.f32 %v1401, %v1426
        %v1428 = vpack.c.bf16 %v1427, %v1427
        %s1429 = scalar_lea.vmem %s8, 64
        %v1430 = vld [vmem:[%s1429] sm:$0xf]
        %v1431 = vld [vmem:[%s1429 + $0x4] sm:$0xf]
        %v1432 = vld [vmem:[%s1429 + $0x8] sm:$0xf]
        %v1433 = vld [vmem:[%s1429 + $0xc] sm:$0xf]
        %v1434 = vld [vmem:[%s1429 + $0x10] sm:$0xf]
        %v1435 = vld [vmem:[%s1429 + $0x14] sm:$0xf]
        %v1436 = vld [vmem:[%s1429 + $0x18] sm:$0xf]
        %v1437 = vld [vmem:[%s1429 + $0x1c] sm:$0xf]
        %v1438 = vld [vmem:[%s1429 + $0x20] sm:$0xf]
        %v1439 = vld [vmem:[%s1429 + $0x24] sm:$0xf]
        %v1440 = vld [vmem:[%s1429 + $0x28] sm:$0xf]
        %v1441 = vld [vmem:[%s1429 + $0x2c] sm:$0xf]
        %v1442 = vld [vmem:[%s1429 + $0x30] sm:$0xf]
        %v1443 = vld [vmem:[%s1429 + $0x34] sm:$0xf]
        %v1444 = vld [vmem:[%s1429 + $0x38] sm:$0xf]
        %v1445 = vld [vmem:[%s1429 + $0x3c] sm:$0xf]
        %v1462 = vunpack.c.l.b16 %v1430
        %v1463 = vunpack.c.l.b16 %v1431
        %v1464 = vunpack.c.l.b16 %v1432
        %v1465 = vunpack.c.l.b16 %v1433
        %v1466 = vunpack.c.l.b16 %v1434
        %v1467 = vunpack.c.l.b16 %v1435
        %v1468 = vunpack.c.l.b16 %v1436
        %v1469 = vunpack.c.l.b16 %v1437
        %v1470 = vunpack.c.l.b16 %v1438
        %v1471 = vunpack.c.l.b16 %v1439
        %v1472 = vunpack.c.l.b16 %v1440
        %v1473 = vunpack.c.l.b16 %v1441
        %v1474 = vunpack.c.l.b16 %v1442
        %v1475 = vunpack.c.l.b16 %v1443
        %v1476 = vunpack.c.l.b16 %v1444
        %v1477 = vunpack.c.l.b16 %v1445
        %v1478 = vpack.c.b16 %v1463, %v1462
        %v1479 = vpack.c.b16 %v1465, %v1464
        %v1480 = vpack.c.b16 %v1467, %v1466
        %v1481 = vpack.c.b16 %v1469, %v1468
        %v1482 = vpack.c.b16 %v1471, %v1470
        %v1483 = vpack.c.b16 %v1473, %v1472
        %v1484 = vpack.c.b16 %v1475, %v1474
        %v1485 = vpack.c.b16 %v1477, %v1476
        %1494 = vmatprep.subr.bf16.mxu0 0
        %1495 = vmatpush1.bf16.msra.mxu0 %v1478
        %1496 = vmatprep.subr.bf16.mxu0 0
        %1497 = vmatpush1.bf16.msra.mxu0 %v1479
        %1498 = vmatprep.subr.bf16.mxu0 0
        %1499 = vmatpush1.bf16.msra.mxu0 %v1480
        %1500 = vmatprep.subr.bf16.mxu0 0
        %1501 = vmatpush1.bf16.msra.mxu0 %v1481
        %1502 = vmatprep.subr.bf16.mxu0 0
        %1503 = vmatpush1.bf16.msra.mxu0 %v1482
        %1504 = vmatprep.subr.bf16.mxu0 0
        %1505 = vmatpush1.bf16.msra.mxu0 %v1483
        %1506 = vmatprep.subr.bf16.mxu0 0
        %1507 = vmatpush1.bf16.msra.mxu0 %v1484
        %1508 = vmatprep.subr.bf16.mxu0 0
        %1509 = vmatpush1.bf16.msra.mxu0 %v1485
        %1510 = vmatprep.subr.bf16.mxu0 0
        %1511 = vmatpush1.bf16.msra.mxu0 0
        %1512 = vmatprep.subr.bf16.mxu0 0
        %1513 = vmatpush1.bf16.msra.mxu0 0
        %1514 = vmatprep.subr.bf16.mxu0 0
        %1515 = vmatpush1.bf16.msra.mxu0 0
        %1516 = vmatprep.subr.bf16.mxu0 0
        %1517 = vmatpush1.bf16.msra.mxu0 0
        %1518 = vmatprep.subr.bf16.mxu0 0
        %1519 = vmatpush1.bf16.msra.mxu0 0
        %1520 = vmatprep.subr.bf16.mxu0 0
        %1521 = vmatpush1.bf16.msra.mxu0 0
        %1522 = vmatprep.subr.bf16.mxu0 0
        %1523 = vmatpush1.bf16.msra.mxu0 0
        %1524 = vmatprep.subr.bf16.mxu0 0
        %1525 = vmatpush1.bf16.msra.mxu0 0
        %1526 = vmatprep.mubr.bf16.mxu0 0
        %1527 = vmatmul.mubr.bf16.gmra.mrb[0].mxu0 %v1428
        %v1528 = vpop.f32.mrb[0].mxu0
        %v1529 = vadd.f32 0.0, %v1528
        %v1530 = vpop.f32.mrb[0].mxu0
        %v1531 = vpop.f32.mrb[0].mxu0
        %v1532 = vpop.f32.mrb[0].mxu0
        %1533 = vdwg.mxu0
        %v1534 = vadd.f32 %v1326, %v1529
        %v1535 = vsel %vm485, %v1534, 0.0
        %1536 = vadd.xlane.f32.xlu0 %v1535
        %v1537 = vpop.xlane.xlu0 %1536
        %v1538 = vmul.f32 %v1537, %v489
        %v1539 = vsub.f32 %v1534, %v1538
        %v1540 = vmul.f32 %v1539, %v1539
        %v1541 = vsel %vm485, %v1540, 0.0
        %1542 = vadd.xlane.f32.xlu0 %v1541
        %v1543 = vpop.xlane.xlu0 %1542
        %v1544 = vmul.f32 %v1543, %v489
        %v1545 = vadd.f32 %v1544, 1e-05
        %v1546 = vrsqrt.pop %v1545
        %v1547 = vmul.f32 %v1539, %v1546
        %v1548 = vpack.c.bf16 %v1547, %v1547
        %v1549 = vld [vmem:[%s9] sm:$0xf]
        %v1550 = vld [vmem:[%s9 + $0x4] sm:$0xf]
        %v1551 = vld [vmem:[%s9 + $0x8] sm:$0xf]
        %v1552 = vld [vmem:[%s9 + $0xc] sm:$0xf]
        %v1553 = vld [vmem:[%s9 + $0x10] sm:$0xf]
        %v1554 = vld [vmem:[%s9 + $0x14] sm:$0xf]
        %v1555 = vld [vmem:[%s9 + $0x18] sm:$0xf]
        %v1556 = vld [vmem:[%s9 + $0x1c] sm:$0xf]
        %v1557 = vld [vmem:[%s9 + $0x20] sm:$0xf]
        %v1558 = vld [vmem:[%s9 + $0x24] sm:$0xf]
        %v1559 = vld [vmem:[%s9 + $0x28] sm:$0xf]
        %v1560 = vld [vmem:[%s9 + $0x2c] sm:$0xf]
        %v1561 = vld [vmem:[%s9 + $0x30] sm:$0xf]
        %v1562 = vld [vmem:[%s9 + $0x34] sm:$0xf]
        %v1563 = vld [vmem:[%s9 + $0x38] sm:$0xf]
        %v1564 = vld [vmem:[%s9 + $0x3c] sm:$0xf]
        %v1581 = vunpack.c.l.b16 %v1549
        %v1582 = vunpack.c.l.b16 %v1550
        %v1583 = vunpack.c.l.b16 %v1551
        %v1584 = vunpack.c.l.b16 %v1552
        %v1585 = vunpack.c.l.b16 %v1553
        %v1586 = vunpack.c.l.b16 %v1554
        %v1587 = vunpack.c.l.b16 %v1555
        %v1588 = vunpack.c.l.b16 %v1556
        %v1589 = vunpack.c.l.b16 %v1557
        %v1590 = vunpack.c.l.b16 %v1558
        %v1591 = vunpack.c.l.b16 %v1559
        %v1592 = vunpack.c.l.b16 %v1560
        %v1593 = vunpack.c.l.b16 %v1561
        %v1594 = vunpack.c.l.b16 %v1562
        %v1595 = vunpack.c.l.b16 %v1563
        %v1596 = vunpack.c.l.b16 %v1564
        %v1597 = vpack.c.b16 %v1582, %v1581
        %v1598 = vpack.c.b16 %v1584, %v1583
        %v1599 = vpack.c.b16 %v1586, %v1585
        %v1600 = vpack.c.b16 %v1588, %v1587
        %v1601 = vpack.c.b16 %v1590, %v1589
        %v1602 = vpack.c.b16 %v1592, %v1591
        %v1603 = vpack.c.b16 %v1594, %v1593
        %v1604 = vpack.c.b16 %v1596, %v1595
        %v1606 = vsel %vm485, %v1548, 0
        %v1609 = vsel %vm485, %v1597, 0
        %v1612 = vsel %vm485, %v1598, 0
        %v1615 = vsel %vm485, %v1599, 0
        %v1618 = vsel %vm485, %v1600, 0
        %v1621 = vsel %vm485, %v1601, 0
        %v1624 = vsel %vm485, %v1602, 0
        %v1627 = vsel %vm485, %v1603, 0
        %v1630 = vsel %vm485, %v1604, 0
        %1632 = vmatprep.subr.bf16.mxu0 0
        %1633 = vmatpush1.bf16.xpose.msra.mxu0 %v1609
        %1634 = vmatprep.subr.bf16.mxu0 0
        %1635 = vmatpush1.bf16.xpose.msra.mxu0 %v1612
        %1636 = vmatprep.subr.bf16.mxu0 0
        %1637 = vmatpush1.bf16.xpose.msra.mxu0 %v1615
        %1638 = vmatprep.subr.bf16.mxu0 0
        %1639 = vmatpush1.bf16.xpose.msra.mxu0 %v1618
        %1640 = vmatprep.subr.bf16.mxu0 0
        %1641 = vmatpush1.bf16.xpose.msra.mxu0 %v1621
        %1642 = vmatprep.subr.bf16.mxu0 0
        %1643 = vmatpush1.bf16.xpose.msra.mxu0 %v1624
        %1644 = vmatprep.subr.bf16.mxu0 0
        %1645 = vmatpush1.bf16.xpose.msra.mxu0 %v1627
        %1646 = vmatprep.subr.bf16.mxu0 0
        %1647 = vmatpush1.bf16.xpose.msra.mxu0 %v1630
        %1648 = vmatprep.subr.bf16.mxu0 0
        %1649 = vmatpush1.bf16.xpose.msra.mxu0 0
        %1650 = vmatprep.subr.bf16.mxu0 0
        %1651 = vmatpush1.bf16.xpose.msra.mxu0 0
        %1652 = vmatprep.subr.bf16.mxu0 0
        %1653 = vmatpush1.bf16.xpose.msra.mxu0 0
        %1654 = vmatprep.subr.bf16.mxu0 0
        %1655 = vmatpush1.bf16.xpose.msra.mxu0 0
        %1656 = vmatprep.subr.bf16.mxu0 0
        %1657 = vmatpush1.bf16.xpose.msra.mxu0 0
        %1658 = vmatprep.subr.bf16.mxu0 0
        %1659 = vmatpush1.bf16.xpose.msra.mxu0 0
        %1660 = vmatprep.subr.bf16.mxu0 0
        %1661 = vmatpush1.bf16.xpose.msra.mxu0 0
        %1662 = vmatprep.subr.bf16.mxu0 0
        %1663 = vmatpush1.bf16.xpose.msra.mxu0 0
        %1664 = vmatprep.mubr.bf16.mxu0 0
        %1665 = vmatmul.mubr.bf16.gmra.mrb[0].mxu0 %v1606
        %v1666 = vpop.f32.mrb[0].mxu0
        %v1667 = vadd.f32 0.0, %v1666
        %v1668 = vpop.f32.mrb[0].mxu0
        %v1669 = vpop.f32.mrb[0].mxu0
        %v1670 = vpop.f32.mrb[0].mxu0
        %1671 = vdwg.mxu0
        %1672 = vst [vmem:[%s350] sm:$0xff] %v1667
        %s1673 = sand.u32 %s247, 1
        %s1674 = scalar_lea.sflag [#allocation3], %s1673
        %s1675 = sand.u32 %s247, 1
        %s1676 = smul.addr %s1675, 8
        %s1677 = scalar_lea.vmem [#allocation2], %s1676
        // Predicated region
        $region61: #{nanogpt_forward.1} parent=59 // pred_check
          %p1678 = pneg %p257
        $region62: #{nanogpt_forward.1} parent=59 // pred_check_branch
          %1680 = sbr.rel (%p1678) target = $region64
        $region63: #{nanogpt_forward.1} parent=59 // pred_region
          %s1682 = ssub.s32 128, 128
          %1683 = vsyncadd %s1674, %s1682
          %s1684 = smul.addr %s24, 128
          %s1685 = scalar_lea.hbm %s10, %s1684
          %s1687 = sshll.u32 %s1677, 4
          %s1688 = int_to_ptr.vmem [resolvable:$true] %s1687
          %1690 = dma.vmem_to_hbm [thread:$0]  %s1688, 128, %s1685, %s1674
        $region64: #{nanogpt_forward.1} parent=59 // pred_fallthru
          _
      $region60: #{nanogpt_forward.1} parent=5 // pred_fallthru
        _
      %p1691 = scmp.le.s32.totalorder 2, %s19
      // Predicated region
      $region65: #{nanogpt_forward.1} parent=5 // pred_check
        %p1692 = pneg %p1691
      $region66: #{nanogpt_forward.1} parent=5 // pred_check_branch
        %1694 = sbr.rel (%p1692) target = $region68
      $region67: #{nanogpt_forward.1} parent=5 // pred_region
        %s1695 = ssub.s32 %s19, 2
        // Predicated region
        $region69: #{nanogpt_forward.1} parent=67 // pred_check
          %p1696 = pneg %p263
        $region70: #{nanogpt_forward.1} parent=67 // pred_check_branch
          %1698 = sbr.rel (%p1696) target = $region72
        $region71: #{nanogpt_forward.1} parent=67 // pred_region
          %s1699 = sand.u32 %s248, 1
          %s1700 = scalar_lea.sflag [#allocation3], %s1699
          %s1701 = sand.u32 %s248, 1
          %s1702 = smul.addr %s1701, 8
          %s1703 = scalar_lea.vmem [#allocation2], %s1702
          %1704 = dma.done %s1700, 128
        $region72: #{nanogpt_forward.1} parent=67 // pred_fallthru
          _
      $region68: #{nanogpt_forward.1} parent=5 // pred_fallthru
        _
    $region6: #{nanogpt_forward.1} parent=1 // loop_footer
      %s23 = sadd.s32 1, %s19
    $region7: #{nanogpt_forward.1} parent=1 // loop_footer_branch
      %18 = sbr.rel target = $region3
    $region8: #{nanogpt_forward.1} parent=1 // loop_exit
      _
    %1705 = vsyncpa [#allocation3], 1
    %s1706 = scalar_lea.sflag [#allocation3], 1
    %1707 = vsyncpa %s1706, 1

</llo_original>
